<compile_context>
chip_gen: v5e
topology: v5e:2x2
jax: 0.10.0
libtpu: 0.0.40
codegen_flags: <defaults>
</compile_context>

<pallas_src>
import math
from functools import partial

import jax
import jax.numpy as jnp
from jax.experimental import pallas as pl
from jax.experimental.pallas import tpu as pltpu


def _round_up(x, m):
    return ((x + m - 1) // m) * m


def basetabnet_kernel(apply_residual,
                      xc_ref, xk_ref,                       # batch-tiled inputs
                      wf_ref,                               # Fourier matrix (2*pi pre-folded)
                      w1_ref, b1_ref, w2_ref, b2_ref,       # CategoricalMLP params
                      wm1_ref, bm1_ref,                     # head Linear 1 (full K)
                      wm2_ref, bm2_ref,                     # head Linear 2 (lane-padded)
                      out_ref):
    xc = xc_ref[...]
    xk = xk_ref[...]

    # ---- processing_layer (Fourier features); 2*pi already folded into wf ----
    proj = jnp.dot(xc, wf_ref[...], preferred_element_type=jnp.float32)
    cont = jnp.concatenate([jnp.sin(proj), jnp.cos(proj)], axis=1)
    if apply_residual:                          # static: only when shapes match
        cont = cont + xc.astype(jnp.float32)

    # ---- CategoricalMLP: Linear -> ReLU -> Linear -> ReLU (elementwise in f32) ----
    h = jnp.dot(xk, w1_ref[...], preferred_element_type=jnp.float32) + b1_ref[...]
    h = jnp.maximum(h, 0.0).astype(w2_ref.dtype)
    cat = jnp.dot(h, w2_ref[...], preferred_element_type=jnp.float32) + b2_ref[...]
    cat = jnp.maximum(cat, 0.0)

    # ---- head MLP: torch.cat + Linear fused into one K=(cont_out+hidden) matmul ----
    combined = jnp.concatenate([cont, cat], axis=1).astype(wm1_ref.dtype)
    h1 = jnp.dot(combined, wm1_ref[...], preferred_element_type=jnp.float32) + bm1_ref[...]
    h1 = jnp.maximum(h1, 0.0).astype(wm2_ref.dtype)
    out_ref[...] = (jnp.dot(h1, wm2_ref[...], preferred_element_type=jnp.float32)
                    + bm2_ref[...]).astype(out_ref.dtype)


def base_tabnet_forward(x_continuous, x_categorical, params, use_residual, *,
                        block_batch=128, compute_dtype=jnp.float32):
    B, d_cont = x_continuous.shape
    d_cat = x_categorical.shape[1]
    n_freq = params["wf"].shape[1]
    cont_out = 2 * n_freq
    hidden = params["w2"].shape[1]
    mlp_hidden = params["wm1"].shape[1]
    output_size = params["wm2"].shape[1]
    apply_residual = bool(use_residual and (cont_out == d_cont))

    # --- batch tiling: grid over batch, weights stay resident ---
    TB = max(8, _round_up(min(block_batch, B), 8))
    B_pad = _round_up(B, TB)
    xc = jnp.pad(x_continuous, ((0, B_pad - B), (0, 0))).astype(compute_dtype)
    xk = jnp.pad(x_categorical, ((0, B_pad - B), (0, 0))).astype(compute_dtype)

    # --- lane-dense output: zero-pad head Linear 2 to a multiple of 128 lanes ---
    n_pad = _round_up(max(output_size, 128), 128)
    wm2_p = jnp.zeros((mlp_hidden, n_pad), jnp.float32).at[:, :output_size].set(params["wm2"])
    bm2_p = jnp.zeros((1, n_pad), jnp.float32).at[:, :output_size].set(params["bm2"])

    # matmul operands in compute_dtype (bf16 on v6e/v7x); biases / elementwise stay f32
    wf = params["wf"].astype(compute_dtype)
    w1 = params["w1"].astype(compute_dtype)
    w2 = params["w2"].astype(compute_dtype)
    wm1 = params["wm1"].astype(compute_dtype)
    wm2_p = wm2_p.astype(compute_dtype)
    b1, b2, bm1 = params["b1"], params["b2"], params["bm1"]

    def resident(a):  # whole-array block, constant block index -> DMA'd once, stays in VMEM
        return pl.BlockSpec(a.shape, lambda i: (0,) * a.ndim)

    in_specs = [
        pl.BlockSpec((TB, d_cont), lambda i: (i, 0)),
        pl.BlockSpec((TB, d_cat), lambda i: (i, 0)),
        resident(wf),
        resident(w1), resident(b1), resident(w2), resident(b2),
        resident(wm1), resident(bm1),
        resident(wm2_p), resident(bm2_p),
    ]
    out_spec = pl.BlockSpec((TB, n_pad), lambda i: (i, 0))

    bytes_in = int(xc.size) * xc.dtype.itemsize + int(xk.size) * xk.dtype.itemsize + sum(
        int(a.size) * a.dtype.itemsize
        for a in (wf, w1, b1, w2, b2, wm1, bm1, wm2_p, bm2_p))
    bytes_out = B_pad * n_pad * 4
    flops = 2 * B_pad * (d_cont * n_freq + d_cat * hidden + hidden * hidden
                         + (cont_out + hidden) * mlp_hidden + mlp_hidden * n_pad)

    out_padded = pl.pallas_call(
        partial(basetabnet_kernel, apply_residual),
        out_shape=jax.ShapeDtypeStruct((B_pad, n_pad), jnp.float32),
        grid=(B_pad // TB,),
        in_specs=in_specs,
        out_specs=out_spec,
        compiler_params=pltpu.CompilerParams(
            dimension_semantics=("parallel",)),   # batch axis sharded across TCs (v7x)
        cost_estimate=pl.CostEstimate(
            flops=flops,
            transcendentals=2 * B_pad * n_freq,
            bytes_accessed=bytes_in + bytes_out),
    )(xc, xk, wf, w1, b1, w2, b2, wm1, bm1, wm2_p, bm2_p)

    return out_padded[:B, :output_size]


def reference_forward(x_continuous, x_categorical, params, use_residual, *,
                      compute_dtype=jnp.float32):
    """Pure-JAX reference mirroring the PyTorch forward (same dtype handling as kernel)."""
    cd = compute_dtype
    f32 = jnp.float32
    xc = x_continuous.astype(cd)
    xk = x_categorical.astype(cd)
    proj = jnp.dot(xc, params["wf"].astype(cd), preferred_element_type=f32)
    cont = jnp.concatenate([jnp.sin(proj), jnp.cos(proj)], axis=1)
    if use_residual and cont.shape == x_continuous.shape:
        cont = cont + xc.astype(f32)
    h = jnp.dot(xk, params["w1"].astype(cd), preferred_element_type=f32) + params["b1"]
    h = jnp.maximum(h, 0.0).astype(cd)
    cat = jnp.dot(h, params["w2"].astype(cd), preferred_element_type=f32) + params["b2"]
    cat = jnp.maximum(cat, 0.0)
    combined = jnp.concatenate([cont, cat], axis=1).astype(cd)
    h1 = jnp.dot(combined, params["wm1"].astype(cd), preferred_element_type=f32) + params["bm1"]
    h1 = jnp.maximum(h1, 0.0).astype(cd)
    return jnp.dot(h1, params["wm2"].astype(cd), preferred_element_type=f32) + params["bm2"]


def init_params(key, d_cont, d_cat, hidden, n_freq, mlp_hidden, output_size):
    ks = jax.random.split(key, 9)

    def linear_init(kw, kb, fan_in, fan_out):
        bound = 1.0 / math.sqrt(fan_in)
        w = jax.random.uniform(kw, (fan_in, fan_out), jnp.float32, -bound, bound)
        b = jax.random.uniform(kb, (1, fan_out), jnp.float32, -bound, bound)
        return w, b

    total = 2 * n_freq + hidden
    # Fourier B matrix with 2*pi folded in (saves a per-element VPU pass in the kernel)
    wf = (2.0 * math.pi) * jax.random.normal(ks[0], (d_cont, n_freq), jnp.float32)
    w1, b1 = linear_init(ks[1], ks[2], d_cat, hidden)
    w2, b2 = linear_init(ks[3], ks[4], hidden, hidden)
    wm1, bm1 = linear_init(ks[5], ks[6], total, mlp_hidden)
    wm2, bm2 = linear_init(ks[7], ks[8], mlp_hidden, output_size)
    return {"wf": wf, "w1": w1, "b1": b1, "w2": w2, "b2": b2,
            "wm1": wm1, "bm1": bm1, "wm2": wm2, "bm2": bm2}


if __name__ == "__main__":
    key = jax.random.PRNGKey(0)
    k_params, k_xc, k_xk = jax.random.split(key, 3)

    batch = 64
    d_cont = 16          # continuous_input_size
    d_cat = 12           # categorical_input_size (one-hot width)
    hidden = 32          # hidden_size
    n_freq = 8           # -> processing_layer.output_dim = 16 == d_cont (residual applies)
    mlp_hidden = 64
    output_size = 3      # classification head
    use_residual = True

    params = init_params(k_params, d_cont, d_cat, hidden, n_freq, mlp_hidden, output_size)

    x_continuous = jax.random.normal(k_xc, (batch, d_cont), jnp.float32)
    cat_idx = jax.random.randint(k_xk, (batch,), 0, d_cat)
    x_categorical = jax.nn.one_hot(cat_idx, d_cat, dtype=jnp.float32)

    # f32 path (v5e-friendly): tight check vs pure-JAX reference. block_batch=32 -> grid of 2.
    out_f32 = base_tabnet_forward(x_continuous, x_categorical, params, use_residual,
                                  block_batch=32, compute_dtype=jnp.float32)
    out_f32 = jax.block_until_ready(out_f32)
    ref_f32 = reference_forward(x_continuous, x_categorical, params, use_residual,
                                compute_dtype=jnp.float32)
    assert out_f32.shape == (batch, output_size)
    assert jnp.allclose(out_f32, ref_f32, atol=1e-5, rtol=1e-5), "f32 mismatch vs reference"

    # bf16 matmul-operand path (v6e/v7x): compare against a reference with identical casts.
    out_bf16 = base_tabnet_forward(x_continuous, x_categorical, params, use_residual,
                                   block_batch=32, compute_dtype=jnp.bfloat16)
    out_bf16 = jax.block_until_ready(out_bf16)
    ref_bf16 = reference_forward(x_continuous, x_categorical, params, use_residual,
                                 compute_dtype=jnp.bfloat16)
    assert out_bf16.shape == (batch, output_size)
    assert jnp.allclose(out_bf16, ref_bf16, atol=2e-2, rtol=2e-2), "bf16 mismatch vs reference"

    print("KERNEL_OK")
</pallas_src>

<mosaic_0001>
module attributes {stable_mosaic.version = 11 : i64} {
  func.func @basetabnet_kernel(%arg0: i32, %arg1: memref<32x16xf32, #tpu.memory_space<vmem>>, %arg2: memref<32x12xf32, #tpu.memory_space<vmem>>, %arg3: memref<16x8xf32, #tpu.memory_space<vmem>>, %arg4: memref<12x32xf32, #tpu.memory_space<vmem>>, %arg5: memref<1x32xf32, #tpu.memory_space<vmem>>, %arg6: memref<32x32xf32, #tpu.memory_space<vmem>>, %arg7: memref<1x32xf32, #tpu.memory_space<vmem>>, %arg8: memref<48x64xf32, #tpu.memory_space<vmem>>, %arg9: memref<1x64xf32, #tpu.memory_space<vmem>>, %arg10: memref<64x128xf32, #tpu.memory_space<vmem>>, %arg11: memref<1x128xf32, #tpu.memory_space<vmem>>, %arg12: memref<32x128xf32, #tpu.memory_space<vmem>>) attributes {dimension_semantics = [#tpu.dimension_semantics<parallel>], iteration_bounds = array<i64: 2>, scalar_prefetch = 0 : i64, scratch_operands = 0 : i64, tpu.core_type = #tpu.core_type<tc>, window_params = [{transform_indices = @transform_0, window_bounds = array<i64: 32, 16>}, {transform_indices = @transform_1, window_bounds = array<i64: 32, 12>}, {pipeline_mode = #tpu.pipeline_mode<synchronous>, transform_indices = @transform_2, window_bounds = array<i64: 16, 8>}, {pipeline_mode = #tpu.pipeline_mode<synchronous>, transform_indices = @transform_3, window_bounds = array<i64: 12, 32>}, {pipeline_mode = #tpu.pipeline_mode<synchronous>, transform_indices = @transform_4, window_bounds = array<i64: 1, 32>}, {pipeline_mode = #tpu.pipeline_mode<synchronous>, transform_indices = @transform_5, window_bounds = array<i64: 32, 32>}, {pipeline_mode = #tpu.pipeline_mode<synchronous>, transform_indices = @transform_6, window_bounds = array<i64: 1, 32>}, {pipeline_mode = #tpu.pipeline_mode<synchronous>, transform_indices = @transform_7, window_bounds = array<i64: 48, 64>}, {pipeline_mode = #tpu.pipeline_mode<synchronous>, transform_indices = @transform_8, window_bounds = array<i64: 1, 64>}, {pipeline_mode = #tpu.pipeline_mode<synchronous>, transform_indices = @transform_9, window_bounds = array<i64: 64, 128>}, {pipeline_mode = #tpu.pipeline_mode<synchronous>, transform_indices = @transform_10, window_bounds = array<i64: 1, 128>}, {transform_indices = @transform_11, window_bounds = array<i64: 32, 128>}]} {
    %c0 = arith.constant 0 : index
    %c0_0 = arith.constant 0 : index
    %0 = vector.load %arg1[%c0, %c0_0] : memref<32x16xf32, #tpu.memory_space<vmem>>, vector<32x16xf32>
    %c0_1 = arith.constant 0 : index
    %c0_2 = arith.constant 0 : index
    %1 = vector.load %arg2[%c0_1, %c0_2] : memref<32x12xf32, #tpu.memory_space<vmem>>, vector<32x12xf32>
    %c0_3 = arith.constant 0 : index
    %c0_4 = arith.constant 0 : index
    %2 = vector.load %arg3[%c0_3, %c0_4] : memref<16x8xf32, #tpu.memory_space<vmem>>, vector<16x8xf32>
    %cst = arith.constant dense<0.000000e+00> : vector<32x8xf32>
    %3 = tpu.matmul %0, %2, %cst {dimension_numbers = #tpu.dot_dimension_numbers<[1], [0], [0], [1], [0, 0, 1, 1], [], []>} : vector<32x16xf32>, vector<16x8xf32>, vector<32x8xf32> -> vector<32x8xf32>
    %4 = math.sin %3 : vector<32x8xf32>
    %5 = math.cos %3 : vector<32x8xf32>
    %6 = tpu.concatenate %4, %5 in 1 : vector<32x8xf32>, vector<32x8xf32> -> vector<32x16xf32>
    %7 = arith.addf %6, %0 : vector<32x16xf32>
    %c0_5 = arith.constant 0 : index
    %c0_6 = arith.constant 0 : index
    %8 = vector.load %arg4[%c0_5, %c0_6] : memref<12x32xf32, #tpu.memory_space<vmem>>, vector<12x32xf32>
    %cst_7 = arith.constant dense<0.000000e+00> : vector<32x32xf32>
    %9 = tpu.matmul %1, %8, %cst_7 {dimension_numbers = #tpu.dot_dimension_numbers<[1], [0], [0], [1], [0, 0, 1, 1], [], []>} : vector<32x12xf32>, vector<12x32xf32>, vector<32x32xf32> -> vector<32x32xf32>
    %c0_8 = arith.constant 0 : index
    %c0_9 = arith.constant 0 : index
    %10 = vector.load %arg5[%c0_8, %c0_9] : memref<1x32xf32, #tpu.memory_space<vmem>>, vector<1x32xf32>
    %11 = vector.broadcast %10 : vector<1x32xf32> to vector<32x32xf32>
    %12 = arith.addf %9, %11 : vector<32x32xf32>
    %cst_10 = arith.constant 0.000000e+00 : f32
    %13 = vector.broadcast %cst_10 : f32 to vector<32x32xf32>
    %14 = arith.maximumf %12, %13 : vector<32x32xf32>
    %c0_11 = arith.constant 0 : index
    %c0_12 = arith.constant 0 : index
    %15 = vector.load %arg6[%c0_11, %c0_12] : memref<32x32xf32, #tpu.memory_space<vmem>>, vector<32x32xf32>
    %cst_13 = arith.constant dense<0.000000e+00> : vector<32x32xf32>
    %16 = tpu.matmul %14, %15, %cst_13 {dimension_numbers = #tpu.dot_dimension_numbers<[1], [0], [0], [1], [0, 0, 1, 1], [], []>} : vector<32x32xf32>, vector<32x32xf32>, vector<32x32xf32> -> vector<32x32xf32>
    %c0_14 = arith.constant 0 : index
    %c0_15 = arith.constant 0 : index
    %17 = vector.load %arg7[%c0_14, %c0_15] : memref<1x32xf32, #tpu.memory_space<vmem>>, vector<1x32xf32>
    %18 = vector.broadcast %17 : vector<1x32xf32> to vector<32x32xf32>
    %19 = arith.addf %16, %18 : vector<32x32xf32>
    %cst_16 = arith.constant 0.000000e+00 : f32
    %20 = vector.broadcast %cst_16 : f32 to vector<32x32xf32>
    %21 = arith.maximumf %19, %20 : vector<32x32xf32>
    %22 = tpu.concatenate %7, %21 in 1 : vector<32x16xf32>, vector<32x32xf32> -> vector<32x48xf32>
    %c0_17 = arith.constant 0 : index
    %c0_18 = arith.constant 0 : index
    %23 = vector.load %arg8[%c0_17, %c0_18] : memref<48x64xf32, #tpu.memory_space<vmem>>, vector<48x64xf32>
    %cst_19 = arith.constant dense<0.000000e+00> : vector<32x64xf32>
    %24 = tpu.matmul %22, %23, %cst_19 {dimension_numbers = #tpu.dot_dimension_numbers<[1], [0], [0], [1], [0, 0, 1, 1], [], []>} : vector<32x48xf32>, vector<48x64xf32>, vector<32x64xf32> -> vector<32x64xf32>
    %c0_20 = arith.constant 0 : index
    %c0_21 = arith.constant 0 : index
    %25 = vector.load %arg9[%c0_20, %c0_21] : memref<1x64xf32, #tpu.memory_space<vmem>>, vector<1x64xf32>
    %26 = vector.broadcast %25 : vector<1x64xf32> to vector<32x64xf32>
    %27 = arith.addf %24, %26 : vector<32x64xf32>
    %cst_22 = arith.constant 0.000000e+00 : f32
    %28 = vector.broadcast %cst_22 : f32 to vector<32x64xf32>
    %29 = arith.maximumf %27, %28 : vector<32x64xf32>
    %c0_23 = arith.constant 0 : index
    %c0_24 = arith.constant 0 : index
    %30 = vector.load %arg10[%c0_23, %c0_24] : memref<64x128xf32, #tpu.memory_space<vmem>>, vector<64x128xf32>
    %cst_25 = arith.constant dense<0.000000e+00> : vector<32x128xf32>
    %31 = tpu.matmul %29, %30, %cst_25 {dimension_numbers = #tpu.dot_dimension_numbers<[1], [0], [0], [1], [0, 0, 1, 1], [], []>} : vector<32x64xf32>, vector<64x128xf32>, vector<32x128xf32> -> vector<32x128xf32>
    %c0_26 = arith.constant 0 : index
    %c0_27 = arith.constant 0 : index
    %32 = vector.load %arg11[%c0_26, %c0_27] : memref<1x128xf32, #tpu.memory_space<vmem>>, vector<1x128xf32>
    %33 = vector.broadcast %32 : vector<1x128xf32> to vector<32x128xf32>
    %34 = arith.addf %31, %33 : vector<32x128xf32>
    %c0_28 = arith.constant 0 : index
    %c0_29 = arith.constant 0 : index
    %35 = vector.load %arg12[%c0_28, %c0_29] : memref<32x128xf32, #tpu.memory_space<vmem>>, vector<32x128xf32>
    tpu.vector_store %arg12[%c0_28, %c0_29], %34 {strides = array<i32>} : memref<32x128xf32, #tpu.memory_space<vmem>>, vector<32x128xf32>,
    return
  }
  func.func @transform_0(%arg0: i32) -> (i32, i32) {
    %c0_i32 = arith.constant 0 : i32
    %c0_i32_0 = arith.constant 0 : i32
    return %arg0, %c0_i32 : i32, i32
  }
  func.func @transform_1(%arg0: i32) -> (i32, i32) {
    %c0_i32 = arith.constant 0 : i32
    %c0_i32_0 = arith.constant 0 : i32
    return %arg0, %c0_i32 : i32, i32
  }
  func.func @transform_2(%arg0: i32) -> (i32, i32) {
    %c0_i32 = arith.constant 0 : i32
    %c0_i32_0 = arith.constant 0 : i32
    %c0_i32_1 = arith.constant 0 : i32
    return %c0_i32, %c0_i32_0 : i32, i32
  }
  func.func @transform_3(%arg0: i32) -> (i32, i32) {
    %c0_i32 = arith.constant 0 : i32
    %c0_i32_0 = arith.constant 0 : i32
    %c0_i32_1 = arith.constant 0 : i32
    return %c0_i32, %c0_i32_0 : i32, i32
  }
  func.func @transform_4(%arg0: i32) -> (i32, i32) {
    %c0_i32 = arith.constant 0 : i32
    %c0_i32_0 = arith.constant 0 : i32
    %c0_i32_1 = arith.constant 0 : i32
    return %c0_i32, %c0_i32_0 : i32, i32
  }
  func.func @transform_5(%arg0: i32) -> (i32, i32) {
    %c0_i32 = arith.constant 0 : i32
    %c0_i32_0 = arith.constant 0 : i32
    %c0_i32_1 = arith.constant 0 : i32
    return %c0_i32, %c0_i32_0 : i32, i32
  }
  func.func @transform_6(%arg0: i32) -> (i32, i32) {
    %c0_i32 = arith.constant 0 : i32
    %c0_i32_0 = arith.constant 0 : i32
    %c0_i32_1 = arith.constant 0 : i32
    return %c0_i32, %c0_i32_0 : i32, i32
  }
  func.func @transform_7(%arg0: i32) -> (i32, i32) {
    %c0_i32 = arith.constant 0 : i32
    %c0_i32_0 = arith.constant 0 : i32
    %c0_i32_1 = arith.constant 0 : i32
    return %c0_i32, %c0_i32_0 : i32, i32
  }
  func.func @transform_8(%arg0: i32) -> (i32, i32) {
    %c0_i32 = arith.constant 0 : i32
    %c0_i32_0 = arith.constant 0 : i32
    %c0_i32_1 = arith.constant 0 : i32
    return %c0_i32, %c0_i32_0 : i32, i32
  }
  func.func @transform_9(%arg0: i32) -> (i32, i32) {
    %c0_i32 = arith.constant 0 : i32
    %c0_i32_0 = arith.constant 0 : i32
    %c0_i32_1 = arith.constant 0 : i32
    return %c0_i32, %c0_i32_0 : i32, i32
  }
  func.func @transform_10(%arg0: i32) -> (i32, i32) {
    %c0_i32 = arith.constant 0 : i32
    %c0_i32_0 = arith.constant 0 : i32
    %c0_i32_1 = arith.constant 0 : i32
    return %c0_i32, %c0_i32_0 : i32, i32
  }
  func.func @transform_11(%arg0: i32) -> (i32, i32) {
    %c0_i32 = arith.constant 0 : i32
    %c0_i32_0 = arith.constant 0 : i32
    return %arg0, %c0_i32 : i32, i32
  }
}

</mosaic_0001>

<llo_original>
// kernel: tpu_custom_call.1
$region0: #{tpu_custom_call.1}
  #allocation0 [shape = 'u32[]', space=smem, size = 0x4, offset = 0x4, fixed_abs, tag = 'smem constant byte address 0x4 - core index']
  #allocation1 [shape = 'u32[72,128]{1,0:T(1,128)}', space=vmem, size = 0x9000, scoped, tag = 'internal scratch']
  %s0 = inlined_call_operand.vmem [shape: f32[64,16], index: 0, kind: input, shape index: {}]
  %s1 = inlined_call_operand.vmem [shape: f32[64,12], index: 1, kind: input, shape index: {}]
  %s2 = inlined_call_operand.vmem [shape: f32[16,8], index: 2, kind: input, shape index: {}]
  %s3 = inlined_call_operand.hbm [shape: f32[12,32], index: 3, kind: input, shape index: {}]
  %s4 = inlined_call_operand.vmem [shape: f32[1,32], index: 4, kind: input, shape index: {}]
  %s5 = inlined_call_operand.vmem [shape: f32[32,32], index: 5, kind: input, shape index: {}]
  %s6 = inlined_call_operand.vmem [shape: f32[1,32], index: 6, kind: input, shape index: {}]
  %s7 = inlined_call_operand.vmem [shape: f32[48,64], index: 7, kind: input, shape index: {}]
  %s8 = inlined_call_operand.vmem [shape: f32[1,64], index: 8, kind: input, shape index: {}]
  %s9 = inlined_call_operand.vmem [shape: f32[64,128], index: 9, kind: input, shape index: {}]
  %s10 = inlined_call_operand.vmem [shape: f32[1,128], index: 10, kind: input, shape index: {}]
  %s11 = inlined_call_operand.hbm [shape: f32[64,128], index: 11, kind: output, shape index: {}]
  %s12 = sld [smem:[#allocation0]]
  $region81: #{tpu_custom_call.1} parent=0
    _
  %s14 = ssub.s32 1, %s12
  %s15 = scalar_select 0, %s14, %s12
  $region1: #{tpu_custom_call.1} parent=0
    #allocation2 [shape = 'u8[8192]{0}', space=vmem, size = 0x2000, scoped, tag = 'input window, operand 3, single buffered']
    #allocation3 [shape = 's32[2]{0}', space=sflag, size = 0x8, scoped, tag = 'scoped memory for tpu_custom_call.1']
    #allocation4 [shape = 's32[2]{0}', space=sflag, size = 0x8, scoped, tag = 'scoped memory for tpu_custom_call.1']
    #allocation5 [shape = 'u8[32768]{0}', space=vmem, size = 0x8000, scoped, tag = 'output window, operand 0']
    %16 = vsyncpa [#allocation3], 0
    %17 = vsyncpa [#allocation4], 0
    %s18 = scalar_lea.sflag [#allocation4], 1
    %19 = vsyncpa %s18, 0
    loop: start=0, step=1, limit=4
    $region2: #{tpu_custom_call.1} parent=1 // loop_pre_header
      _
    $region3: #{tpu_custom_call.1} parent=1 // loop_header
      %s21 = sphi 0, %s25
      %p22 = scmp.ge.s32.totalorder %s21, 4
      %s31 = sphi 0, %s33
      %s34 = sphi 0, %s31
      %s35 = sphi 0, %s34
      %s51 = sphi 0, %s35
      %s57 = sphi 0, %s59
      %s60 = sphi 0, %s57
      %s61 = sphi 0, %s60
      %s77 = sphi 0, %s61
      %s81 = sphi 0, %s81
      %s83 = sphi 0, %s81
      %s84 = sphi 0, %s83
      %s98 = sphi 0, %s84
      %s102 = sphi 0, %s102
      %s104 = sphi 0, %s102
      %s105 = sphi 0, %s104
      %s119 = sphi 0, %s105
      %s123 = sphi 0, %s123
      %s125 = sphi 0, %s123
      %s126 = sphi 0, %s125
      %s140 = sphi 0, %s126
      %s144 = sphi 0, %s144
      %s146 = sphi 0, %s144
      %s147 = sphi 0, %s146
      %s161 = sphi 0, %s147
      %s165 = sphi 0, %s165
      %s167 = sphi 0, %s165
      %s168 = sphi 0, %s167
      %s182 = sphi 0, %s168
      %s186 = sphi 0, %s186
      %s188 = sphi 0, %s186
      %s189 = sphi 0, %s188
      %s203 = sphi 0, %s189
      %s207 = sphi 0, %s207
      %s209 = sphi 0, %s207
      %s210 = sphi 0, %s209
      %s224 = sphi 0, %s210
      %s228 = sphi 0, %s228
      %s230 = sphi 0, %s228
      %s231 = sphi 0, %s230
      %s245 = sphi 0, %s231
      %s249 = sphi 0, %s249
      %s251 = sphi 0, %s249
      %s252 = sphi 0, %s251
      %s266 = sphi 0, %s252
      %s272 = sphi 0, %s274
      %s275 = sphi 0, %s272
      %s276 = sphi 0, %s275
      %s292 = sphi 0, %s276
    $region4: #{tpu_custom_call.1} parent=1 // loop_header_branch
      %24 = sbr.rel (%p22) target = $region8
    $region5: #{tpu_custom_call.1} parent=1 // loop_body
      %s26 = ssub.s32 %s21, 1
      %s27 = ssub.s32 %s21, 2
      %s28 = sadd.s32 %s21, 1
      %s29 = ssub.s32 %s21, %s28
      %p30 = scmp.eq.s32.totalorder %s29, 0
      %s32 = sadd.s32 %s31, 1
      %s33 = scalar_select %p30, %s31, %s32
      %p36 = pneg %p30
      %p37 = scmp.eq.s32.totalorder %s21, 1
      %p38 = por %p36, %p37
      %p39 = scmp.ne.s32.totalorder %s31, %s34
      %p40 = scmp.eq.s32.totalorder %s21, 0
      %p41 = por %p39, %p40
      %p42 = scmp.ne.s32.totalorder %s31, %s34
      %p43 = scmp.eq.s32.totalorder %s26, 1
      %p44 = por %p42, %p43
      %p45 = scmp.ne.s32.totalorder %s34, %s35
      %p46 = scmp.eq.s32.totalorder %s26, 0
      %p47 = por %p45, %p46
      %p48 = scmp.ne.s32.totalorder %s34, %s35
      %p49 = scmp.eq.s32.totalorder %s27, 1
      %p50 = por %p48, %p49
      %p52 = scmp.ne.s32.totalorder %s35, %s51
      %p53 = scmp.eq.s32.totalorder %s27, 0
      %p54 = por %p52, %p53
      %s55 = ssub.s32 %s21, %s28
      %p56 = scmp.eq.s32.totalorder %s55, 0
      %s58 = sadd.s32 %s57, 1
      %s59 = scalar_select %p56, %s57, %s58
      %p62 = pneg %p56
      %p63 = scmp.eq.s32.totalorder %s21, 1
      %p64 = por %p62, %p63
      %p65 = scmp.ne.s32.totalorder %s57, %s60
      %p66 = scmp.eq.s32.totalorder %s21, 0
      %p67 = por %p65, %p66
      %p68 = scmp.ne.s32.totalorder %s57, %s60
      %p69 = scmp.eq.s32.totalorder %s26, 1
      %p70 = por %p68, %p69
      %p71 = scmp.ne.s32.totalorder %s60, %s61
      %p72 = scmp.eq.s32.totalorder %s26, 0
      %p73 = por %p71, %p72
      %p74 = scmp.ne.s32.totalorder %s60, %s61
      %p75 = scmp.eq.s32.totalorder %s27, 1
      %p76 = por %p74, %p75
      %p78 = scmp.ne.s32.totalorder %s61, %s77
      %p79 = scmp.eq.s32.totalorder %s27, 0
      %p80 = por %p78, %p79
      %s82 = sadd.s32 %s81, 1
      %p85 = scmp.eq.s32.totalorder %s21, 1
      %p86 = scmp.ne.s32.totalorder %s81, %s83
      %p87 = scmp.eq.s32.totalorder %s21, 0
      %p88 = por %p86, %p87
      %p89 = scmp.ne.s32.totalorder %s81, %s83
      %p90 = scmp.eq.s32.totalorder %s26, 1
      %p91 = por %p89, %p90
      %p92 = scmp.ne.s32.totalorder %s83, %s84
      %p93 = scmp.eq.s32.totalorder %s26, 0
      %p94 = por %p92, %p93
      %p95 = scmp.ne.s32.totalorder %s83, %s84
      %p96 = scmp.eq.s32.totalorder %s27, 1
      %p97 = por %p95, %p96
      %p99 = scmp.ne.s32.totalorder %s84, %s98
      %p100 = scmp.eq.s32.totalorder %s27, 0
      %p101 = por %p99, %p100
      %s103 = sadd.s32 %s102, 1
      %p106 = scmp.eq.s32.totalorder %s21, 1
      %p107 = scmp.ne.s32.totalorder %s102, %s104
      %p108 = scmp.eq.s32.totalorder %s21, 0
      %p109 = por %p107, %p108
      %p110 = scmp.ne.s32.totalorder %s102, %s104
      %p111 = scmp.eq.s32.totalorder %s26, 1
      %p112 = por %p110, %p111
      %p113 = scmp.ne.s32.totalorder %s104, %s105
      %p114 = scmp.eq.s32.totalorder %s26, 0
      %p115 = por %p113, %p114
      %p116 = scmp.ne.s32.totalorder %s104, %s105
      %p117 = scmp.eq.s32.totalorder %s27, 1
      %p118 = por %p116, %p117
      %p120 = scmp.ne.s32.totalorder %s105, %s119
      %p121 = scmp.eq.s32.totalorder %s27, 0
      %p122 = por %p120, %p121
      %s124 = sadd.s32 %s123, 1
      %p127 = scmp.eq.s32.totalorder %s21, 1
      %p128 = scmp.ne.s32.totalorder %s123, %s125
      %p129 = scmp.eq.s32.totalorder %s21, 0
      %p130 = por %p128, %p129
      %p131 = scmp.ne.s32.totalorder %s123, %s125
      %p132 = scmp.eq.s32.totalorder %s26, 1
      %p133 = por %p131, %p132
      %p134 = scmp.ne.s32.totalorder %s125, %s126
      %p135 = scmp.eq.s32.totalorder %s26, 0
      %p136 = por %p134, %p135
      %p137 = scmp.ne.s32.totalorder %s125, %s126
      %p138 = scmp.eq.s32.totalorder %s27, 1
      %p139 = por %p137, %p138
      %p141 = scmp.ne.s32.totalorder %s126, %s140
      %p142 = scmp.eq.s32.totalorder %s27, 0
      %p143 = por %p141, %p142
      %s145 = sadd.s32 %s144, 1
      %p148 = scmp.eq.s32.totalorder %s21, 1
      %p149 = scmp.ne.s32.totalorder %s144, %s146
      %p150 = scmp.eq.s32.totalorder %s21, 0
      %p151 = por %p149, %p150
      %p152 = scmp.ne.s32.totalorder %s144, %s146
      %p153 = scmp.eq.s32.totalorder %s26, 1
      %p154 = por %p152, %p153
      %p155 = scmp.ne.s32.totalorder %s146, %s147
      %p156 = scmp.eq.s32.totalorder %s26, 0
      %p157 = por %p155, %p156
      %p158 = scmp.ne.s32.totalorder %s146, %s147
      %p159 = scmp.eq.s32.totalorder %s27, 1
      %p160 = por %p158, %p159
      %p162 = scmp.ne.s32.totalorder %s147, %s161
      %p163 = scmp.eq.s32.totalorder %s27, 0
      %p164 = por %p162, %p163
      %s166 = sadd.s32 %s165, 1
      %p169 = scmp.eq.s32.totalorder %s21, 1
      %p170 = scmp.ne.s32.totalorder %s165, %s167
      %p171 = scmp.eq.s32.totalorder %s21, 0
      %p172 = por %p170, %p171
      %p173 = scmp.ne.s32.totalorder %s165, %s167
      %p174 = scmp.eq.s32.totalorder %s26, 1
      %p175 = por %p173, %p174
      %p176 = scmp.ne.s32.totalorder %s167, %s168
      %p177 = scmp.eq.s32.totalorder %s26, 0
      %p178 = por %p176, %p177
      %p179 = scmp.ne.s32.totalorder %s167, %s168
      %p180 = scmp.eq.s32.totalorder %s27, 1
      %p181 = por %p179, %p180
      %p183 = scmp.ne.s32.totalorder %s168, %s182
      %p184 = scmp.eq.s32.totalorder %s27, 0
      %p185 = por %p183, %p184
      %s187 = sadd.s32 %s186, 1
      %p190 = scmp.eq.s32.totalorder %s21, 1
      %p191 = scmp.ne.s32.totalorder %s186, %s188
      %p192 = scmp.eq.s32.totalorder %s21, 0
      %p193 = por %p191, %p192
      %p194 = scmp.ne.s32.totalorder %s186, %s188
      %p195 = scmp.eq.s32.totalorder %s26, 1
      %p196 = por %p194, %p195
      %p197 = scmp.ne.s32.totalorder %s188, %s189
      %p198 = scmp.eq.s32.totalorder %s26, 0
      %p199 = por %p197, %p198
      %p200 = scmp.ne.s32.totalorder %s188, %s189
      %p201 = scmp.eq.s32.totalorder %s27, 1
      %p202 = por %p200, %p201
      %p204 = scmp.ne.s32.totalorder %s189, %s203
      %p205 = scmp.eq.s32.totalorder %s27, 0
      %p206 = por %p204, %p205
      %s208 = sadd.s32 %s207, 1
      %p211 = scmp.eq.s32.totalorder %s21, 1
      %p212 = scmp.ne.s32.totalorder %s207, %s209
      %p213 = scmp.eq.s32.totalorder %s21, 0
      %p214 = por %p212, %p213
      %p215 = scmp.ne.s32.totalorder %s207, %s209
      %p216 = scmp.eq.s32.totalorder %s26, 1
      %p217 = por %p215, %p216
      %p218 = scmp.ne.s32.totalorder %s209, %s210
      %p219 = scmp.eq.s32.totalorder %s26, 0
      %p220 = por %p218, %p219
      %p221 = scmp.ne.s32.totalorder %s209, %s210
      %p222 = scmp.eq.s32.totalorder %s27, 1
      %p223 = por %p221, %p222
      %p225 = scmp.ne.s32.totalorder %s210, %s224
      %p226 = scmp.eq.s32.totalorder %s27, 0
      %p227 = por %p225, %p226
      %s229 = sadd.s32 %s228, 1
      %p232 = scmp.eq.s32.totalorder %s21, 1
      %p233 = scmp.ne.s32.totalorder %s228, %s230
      %p234 = scmp.eq.s32.totalorder %s21, 0
      %p235 = por %p233, %p234
      %p236 = scmp.ne.s32.totalorder %s228, %s230
      %p237 = scmp.eq.s32.totalorder %s26, 1
      %p238 = por %p236, %p237
      %p239 = scmp.ne.s32.totalorder %s230, %s231
      %p240 = scmp.eq.s32.totalorder %s26, 0
      %p241 = por %p239, %p240
      %p242 = scmp.ne.s32.totalorder %s230, %s231
      %p243 = scmp.eq.s32.totalorder %s27, 1
      %p244 = por %p242, %p243
      %p246 = scmp.ne.s32.totalorder %s231, %s245
      %p247 = scmp.eq.s32.totalorder %s27, 0
      %p248 = por %p246, %p247
      %s250 = sadd.s32 %s249, 1
      %p253 = scmp.eq.s32.totalorder %s21, 1
      %p254 = scmp.ne.s32.totalorder %s249, %s251
      %p255 = scmp.eq.s32.totalorder %s21, 0
      %p256 = por %p254, %p255
      %p257 = scmp.ne.s32.totalorder %s249, %s251
      %p258 = scmp.eq.s32.totalorder %s26, 1
      %p259 = por %p257, %p258
      %p260 = scmp.ne.s32.totalorder %s251, %s252
      %p261 = scmp.eq.s32.totalorder %s26, 0
      %p262 = por %p260, %p261
      %p263 = scmp.ne.s32.totalorder %s251, %s252
      %p264 = scmp.eq.s32.totalorder %s27, 1
      %p265 = por %p263, %p264
      %p267 = scmp.ne.s32.totalorder %s252, %s266
      %p268 = scmp.eq.s32.totalorder %s27, 0
      %p269 = por %p267, %p268
      %s270 = ssub.s32 %s21, %s28
      %p271 = scmp.eq.s32.totalorder %s270, 0
      %s273 = sadd.s32 %s272, 1
      %s274 = scalar_select %p271, %s272, %s273
      %p277 = pneg %p271
      %p278 = scmp.eq.s32.totalorder %s21, 1
      %p279 = por %p277, %p278
      %p280 = scmp.ne.s32.totalorder %s272, %s275
      %p281 = scmp.eq.s32.totalorder %s21, 0
      %p282 = por %p280, %p281
      %p283 = scmp.ne.s32.totalorder %s272, %s275
      %p284 = scmp.eq.s32.totalorder %s26, 1
      %p285 = por %p283, %p284
      %p286 = scmp.ne.s32.totalorder %s275, %s276
      %p287 = scmp.eq.s32.totalorder %s26, 0
      %p288 = por %p286, %p287
      %p289 = scmp.ne.s32.totalorder %s275, %s276
      %p290 = scmp.eq.s32.totalorder %s27, 1
      %p291 = por %p289, %p290
      %p293 = scmp.ne.s32.totalorder %s276, %s292
      %p294 = scmp.eq.s32.totalorder %s27, 0
      %p295 = por %p293, %p294
      %p296 = scmp.le.s32.totalorder 1, %s21
      %p297 = scmp.lt.s32.totalorder %s21, 3
      %p298 = pnand %p296, %p297
      %p299 = pneg %p298
      // Predicated region
      $region9: #{tpu_custom_call.1} parent=5 // pred_check
        _
      $region10: #{tpu_custom_call.1} parent=5 // pred_check_branch
        %301 = sbr.rel (%p298) target = $region12
      $region11: #{tpu_custom_call.1} parent=5 // pred_region
        %s302 = ssub.s32 %s21, 1
        // Predicated region
        $region13: #{tpu_custom_call.1} parent=11 // pred_check
          %p303 = pneg %p94
        $region14: #{tpu_custom_call.1} parent=11 // pred_check_branch
          %305 = sbr.rel (%p303) target = $region16
        $region15: #{tpu_custom_call.1} parent=11 // pred_region
          _
        $region16: #{tpu_custom_call.1} parent=11 // pred_fallthru
          _
        // Predicated region
        $region17: #{tpu_custom_call.1} parent=11 // pred_check
          %p306 = pneg %p115
        $region18: #{tpu_custom_call.1} parent=11 // pred_check_branch
          %308 = sbr.rel (%p306) target = $region20
        $region19: #{tpu_custom_call.1} parent=11 // pred_region
          %310 = vsyncadd [#allocation3], 0
          %s311 = sshll.u32 %s3, 4
          %s312 = int_to_ptr.hbm [resolvable:$true] %s311
          %s313 = sshll.u32 [#allocation2], 4
          %s314 = int_to_ptr.vmem [resolvable:$true] %s313
          %319 = dma.hbm_to_vmem [thread:$0]  %s312, 256, %s314, [#allocation3], 128, 128, 8
        $region20: #{tpu_custom_call.1} parent=11 // pred_fallthru
          _
        // Predicated region
        $region21: #{tpu_custom_call.1} parent=11 // pred_check
          %p320 = pneg %p136
        $region22: #{tpu_custom_call.1} parent=11 // pred_check_branch
          %322 = sbr.rel (%p320) target = $region24
        $region23: #{tpu_custom_call.1} parent=11 // pred_region
          _
        $region24: #{tpu_custom_call.1} parent=11 // pred_fallthru
          _
        // Predicated region
        $region25: #{tpu_custom_call.1} parent=11 // pred_check
          %p323 = pneg %p157
        $region26: #{tpu_custom_call.1} parent=11 // pred_check_branch
          %325 = sbr.rel (%p323) target = $region28
        $region27: #{tpu_custom_call.1} parent=11 // pred_region
          _
        $region28: #{tpu_custom_call.1} parent=11 // pred_fallthru
          _
        // Predicated region
        $region29: #{tpu_custom_call.1} parent=11 // pred_check
          %p326 = pneg %p178
        $region30: #{tpu_custom_call.1} parent=11 // pred_check_branch
          %328 = sbr.rel (%p326) target = $region32
        $region31: #{tpu_custom_call.1} parent=11 // pred_region
          _
        $region32: #{tpu_custom_call.1} parent=11 // pred_fallthru
          _
        // Predicated region
        $region33: #{tpu_custom_call.1} parent=11 // pred_check
          %p329 = pneg %p199
        $region34: #{tpu_custom_call.1} parent=11 // pred_check_branch
          %331 = sbr.rel (%p329) target = $region36
        $region35: #{tpu_custom_call.1} parent=11 // pred_region
          _
        $region36: #{tpu_custom_call.1} parent=11 // pred_fallthru
          _
        // Predicated region
        $region37: #{tpu_custom_call.1} parent=11 // pred_check
          %p332 = pneg %p220
        $region38: #{tpu_custom_call.1} parent=11 // pred_check_branch
          %334 = sbr.rel (%p332) target = $region40
        $region39: #{tpu_custom_call.1} parent=11 // pred_region
          _
        $region40: #{tpu_custom_call.1} parent=11 // pred_fallthru
          _
        // Predicated region
        $region41: #{tpu_custom_call.1} parent=11 // pred_check
          %p335 = pneg %p241
        $region42: #{tpu_custom_call.1} parent=11 // pred_check_branch
          %337 = sbr.rel (%p335) target = $region44
        $region43: #{tpu_custom_call.1} parent=11 // pred_region
          _
        $region44: #{tpu_custom_call.1} parent=11 // pred_fallthru
          _
        // Predicated region
        $region45: #{tpu_custom_call.1} parent=11 // pred_check
          %p338 = pneg %p262
        $region46: #{tpu_custom_call.1} parent=11 // pred_check_branch
          %340 = sbr.rel (%p338) target = $region48
        $region47: #{tpu_custom_call.1} parent=11 // pred_region
          _
        $region48: #{tpu_custom_call.1} parent=11 // pred_fallthru
          _
      $region12: #{tpu_custom_call.1} parent=5 // pred_fallthru
        _
      %p341 = scmp.lt.s32.totalorder %s21, 2
      // Predicated region
      $region49: #{tpu_custom_call.1} parent=5 // pred_check
        %p342 = pneg %p341
      $region50: #{tpu_custom_call.1} parent=5 // pred_check_branch
        %344 = sbr.rel (%p342) target = $region52
      $region51: #{tpu_custom_call.1} parent=5 // pred_region
        // Predicated region
        $region53: #{tpu_custom_call.1} parent=51 // pred_check
          %p345 = pneg %p41
        $region54: #{tpu_custom_call.1} parent=51 // pred_check_branch
          %347 = sbr.rel (%p345) target = $region56
        $region55: #{tpu_custom_call.1} parent=51 // pred_region
          %s348 = smul.u32 4, %s21
          %p349 = scmp.lt.s32.totalorder %s348, 7
          %s350 = scalar_select %p349, %s348, 7
          %s351 = smul.addr %s350, 8
          %s352 = scalar_lea.vmem %s0, %s351
          %s353 = smul.u32 4, %s21
        $region56: #{tpu_custom_call.1} parent=51 // pred_fallthru
          _
        // Predicated region
        $region57: #{tpu_custom_call.1} parent=51 // pred_check
          %p354 = pneg %p67
        $region58: #{tpu_custom_call.1} parent=51 // pred_check_branch
          %356 = sbr.rel (%p354) target = $region60
        $region59: #{tpu_custom_call.1} parent=51 // pred_region
          %s357 = smul.u32 4, %s21
          %p358 = scmp.lt.s32.totalorder %s357, 7
          %s359 = scalar_select %p358, %s357, 7
          %s360 = smul.addr %s359, 8
          %s361 = scalar_lea.vmem %s1, %s360
          %s362 = smul.u32 4, %s21
        $region60: #{tpu_custom_call.1} parent=51 // pred_fallthru
          _
      $region52: #{tpu_custom_call.1} parent=5 // pred_fallthru
        _
      %p363 = scmp.le.s32.totalorder 1, %s21
      %p364 = scmp.lt.s32.totalorder %s21, 3
      %p365 = pnand %p363, %p364
      %p366 = pneg %p365
      // Predicated region
      $region61: #{tpu_custom_call.1} parent=5 // pred_check
        _
      $region62: #{tpu_custom_call.1} parent=5 // pred_check_branch
        %368 = sbr.rel (%p365) target = $region64
      $region63: #{tpu_custom_call.1} parent=5 // pred_region
        %s369 = ssub.s32 %s21, 1
        // Predicated region
        $region65: #{tpu_custom_call.1} parent=63 // pred_check
          %p370 = pneg %p115
        $region66: #{tpu_custom_call.1} parent=63 // pred_check_branch
          %372 = sbr.rel (%p370) target = $region68
        $region67: #{tpu_custom_call.1} parent=63 // pred_region
          %374 = dma.done [#allocation3], 256
        $region68: #{tpu_custom_call.1} parent=63 // pred_fallthru
          _
        %s375 = smul.u32 4, %s26
        %p376 = scmp.lt.s32.totalorder %s375, 7
        %s377 = scalar_select %p376, %s375, 7
        %s378 = smul.addr %s377, 8
        %s379 = scalar_lea.vmem %s0, %s378
        %p380 = pneg %p47
        %p381 = pneg %p44
        %s382 = smul.u32 4, %s26
        %p383 = scmp.lt.s32.totalorder %s382, 7
        %s384 = scalar_select %p383, %s382, 7
        %s385 = smul.addr %s384, 8
        %s386 = scalar_lea.vmem %s1, %s385
        %p387 = pneg %p73
        %p388 = pneg %p70
        %p389 = pneg %p94
        %p390 = pneg %p91
        %p391 = pneg %p115
        %p392 = pneg %p112
        %p393 = pneg %p136
        %p394 = pneg %p133
        %p395 = pneg %p157
        %p396 = pneg %p154
        %p397 = pneg %p178
        %p398 = pneg %p175
        %p399 = pneg %p199
        %p400 = pneg %p196
        %p401 = pneg %p220
        %p402 = pneg %p217
        %p403 = pneg %p241
        %p404 = pneg %p238
        %p405 = pneg %p262
        %p406 = pneg %p259
        %p407 = pneg %p288
        %p408 = pneg %p285
        %s409 = sand.u32 %s275, 1
        %s410 = scalar_lea.sflag [#allocation4], %s409
        %s411 = sand.u32 %s275, 1
        %s412 = smul.addr %s411, 32
        %s413 = scalar_lea.vmem [#allocation5], %s412
        %s414 = smul.u32 4, %s26
        %p415 = scmp.lt.s32.totalorder %s414, 7
        %s416 = scalar_select %p415, %s414, 7
        %s417 = smul.addr %s416, 8
        %s418 = scalar_lea.vmem %s0, %s417
        %s419 = smul.u32 4, %s26
        %s420 = smul.u32 4, %s26
        %p421 = scmp.lt.s32.totalorder %s420, 7
        %s422 = scalar_select %p421, %s420, 7
        %s423 = smul.addr %s422, 8
        %s424 = scalar_lea.vmem %s1, %s423
        %s425 = smul.u32 4, %s26
        %s426 = smul.u32 4, %s26
        %v427 = vld [vmem:[%s418] sm:$0xff]
        %v428 = vld [vmem:[%s418 + $0x8] sm:$0xff]
        %v429 = vld [vmem:[%s418 + $0x10] sm:$0xff]
        %v430 = vld [vmem:[%s418 + $0x18] sm:$0xff]
        %v431 = vld [vmem:[%s424] sm:$0xff]
        %v432 = vld [vmem:[%s424 + $0x8] sm:$0xff]
        %v433 = vld [vmem:[%s424 + $0x10] sm:$0xff]
        %v434 = vld [vmem:[%s424 + $0x18] sm:$0xff]
        %v435 = vld [vmem:[%s2] sm:$0xff]
        %v436 = vld [vmem:[%s2 + $0x8] sm:$0xff]
        %vm437 = vcmask 130048
        %v439 = vsel %vm437, %v427, 0
        %v442 = vsel %vm437, %v428, 0
        %v445 = vsel %vm437, %v429, 0
        %v448 = vsel %vm437, %v430, 0
        %450 = vmatpush.msra.mxu0 0.0
        %451 = vmatpush.msra.mxu0 0.0
        %452 = vmatpush.msra.mxu0 0.0
        %453 = vmatpush.msra.mxu0 0.0
        %454 = vmatpush.msra.mxu0 0.0
        %455 = vmatpush.msra.mxu0 0.0
        %456 = vmatpush.msra.mxu0 0.0
        %457 = vmatpush.msra.mxu0 0.0
        %458 = vmatpush.msra.mxu0 0.0
        %459 = vmatpush.msra.mxu0 0.0
        %460 = vmatpush.msra.mxu0 0.0
        %461 = vmatpush.msra.mxu0 0.0
        %462 = vmatpush.msra.mxu0 0.0
        %463 = vmatpush.msra.mxu0 0.0
        %464 = vmatpush.msra.mxu0 %v436
        %465 = vmatpush.msra.mxu0 %v435
        %466 = vmatmul.f32.gmra.mxu0 %v439
        %v467 = vpop.f32.mrf.mxu0
        %v468 = vadd.f32 0.0, %v467
        %469 = vmatmul.f32.gmra.mxu0 %v442
        %v470 = vpop.f32.mrf.mxu0
        %v471 = vadd.f32 0.0, %v470
        %472 = vmatmul.f32.gmra.mxu0 %v445
        %v473 = vpop.f32.mrf.mxu0
        %v474 = vadd.f32 0.0, %v473
        %475 = vmatmul.f32.gmra.mxu0 %v448
        %v476 = vpop.f32.mrf.mxu0
        %v477 = vadd.f32 0.0, %v476
        %478 = vdwg.mxu0
        %v479 = vand.u32 2147483647, %v468
        %vm480 = vcmp.le.f32.partialorder %v479, 0.7853982
        %vm481 = vcmp.lt.s32.totalorder %v468, 0
        %v482 = vand.u32 %v468, 2139095040
        %v483 = vshrl.u32 %v482, 23
        %v484 = vsub.s32 %v483, 127
        %v485 = vand.u32 2147483647, %v468
        %v486 = vand.u32 %v485, 8388607
        %v487 = vor.u32 %v486, 8388608
        %v488 = vsub.s32 0, %v487
        %v489 = vadd.s32 %v484, 1
        %vm490 = vcmp.gt.s32.totalorder %v489, 0
        %v491 = vsel %vm490, %v489, 0
        %v492 = vshrl.u32 %v491, 5
        %v493 = vand.u32 %v491, 31
        %v494 = vsub.s32 32, %v493
        %v495 = vshrl.u32 683565275, %v494
        %v496 = vshll.u32 683565275, %v493
        %v497 = vshrl.u32 2475754826, %v494
        %v498 = vor.u32 %v496, %v497
        %v499 = vshll.u32 2475754826, %v493
        %v500 = vshrl.u32 2131351028, %v494
        %v501 = vor.u32 %v499, %v500
        %v502 = vshll.u32 2131351028, %v493
        %v503 = vshrl.u32 2102212464, %v494
        %v504 = vor.u32 %v502, %v503
        %v505 = vshll.u32 2102212464, %v493
        %v506 = vshrl.u32 920167782, %v494
        %v507 = vor.u32 %v505, %v506
        %v508 = vshll.u32 920167782, %v493
        %v509 = vshrl.u32 1326507024, %v494
        %v510 = vor.u32 %v508, %v509
        %vm511 = vcmp.lt.s32.totalorder %v492, 1
        %vm512 = vcmp.lt.s32.totalorder %v492, 2
        %vm513 = vcmp.lt.s32.totalorder %v492, 3
        %vm514 = vcmp.lt.s32.totalorder %v492, 4
        %v515 = vsel %vm511, %v495, %v498
        %v516 = vsel %vm514, %v504, 2102212464
        %v517 = vsel %vm513, %v501, %v516
        %v518 = vsel %vm512, %v515, %v517
        %v519 = vsel %vm511, %v498, %v501
        %v520 = vsel %vm514, %v507, 920167782
        %v521 = vsel %vm513, %v504, %v520
        %v522 = vsel %vm512, %v519, %v521
        %v523 = vsel %vm511, %v501, %v504
        %v524 = vsel %vm514, %v510, 1326507024
        %v525 = vsel %vm513, %v507, %v524
        %v526 = vsel %vm512, %v523, %v525
        %v527 = vshll.u32 %v487, 8
        %v528 = vand.u32 %v527, 65535
        %v529 = vshrl.u32 %v527, 16
        %v530 = vand.u32 %v526, 65535
        %v531 = vshrl.u32 %v526, 16
        %v532 = vmul.u32 %v528, %v530
        %v533 = vmul.u32 %v528, %v531
        %v534 = vmul.u32 %v529, %v530
        %v535 = vmul.u32 %v529, %v531
        %v536 = vshll.u32 %v533, 16
        %v537 = vshrl.u32 %v533, 16
        %v538 = vshll.u32 %v534, 16
        %v539 = vshrl.u32 %v534, 16
        %vm540 = vc.u32 %v532, %v536
        %v541 = vsel %vm540, 1, 0
        %v542 = vadd.s32 %v532, %v536
        %v543 = vadd.s32 %v535, %v541
        %vm544 = vc.u32 %v542, %v538
        %v545 = vsel %vm544, 1, 0
        %v546 = vadd.s32 %v542, %v538
        %v547 = vadd.s32 %v543, %v545
        %v548 = vadd.s32 %v547, %v537
        %v549 = vadd.s32 %v548, %v539
        %v550 = vand.u32 %v527, 65535
        %v551 = vshrl.u32 %v527, 16
        %v552 = vand.u32 %v522, 65535
        %v553 = vshrl.u32 %v522, 16
        %v554 = vmul.u32 %v550, %v552
        %v555 = vmul.u32 %v550, %v553
        %v556 = vmul.u32 %v551, %v552
        %v557 = vmul.u32 %v551, %v553
        %v558 = vshll.u32 %v555, 16
        %v559 = vshrl.u32 %v555, 16
        %v560 = vshll.u32 %v556, 16
        %v561 = vshrl.u32 %v556, 16
        %vm562 = vc.u32 %v554, %v558
        %v563 = vsel %vm562, 1, 0
        %v564 = vadd.s32 %v554, %v558
        %v565 = vadd.s32 %v557, %v563
        %vm566 = vc.u32 %v564, %v560
        %v567 = vsel %vm566, 1, 0
        %v568 = vadd.s32 %v564, %v560
        %v569 = vadd.s32 %v565, %v567
        %v570 = vadd.s32 %v569, %v559
        %v571 = vadd.s32 %v570, %v561
        %v572 = vmul.u32 %v527, %v518
        %v573 = vadd.s32 %v549, %v568
        %vm574 = vc.u32 %v549, %v568
        %v575 = vadd.s32 %v571, 1
        %v576 = vsel %vm574, %v575, %v571
        %v577 = vadd.s32 %v572, %v576
        %v578 = vadd.s32 %v577, 536870912
        %v579 = vshrl.u32 %v578, 30
        %v580 = vshll.u32 %v579, 30
        %v581 = vsub.s32 %v577, %v580
        %vm582 = vcmp.lt.s32.totalorder %v581, 0
        %v583 = vsub.s32 0, %v581
        %v584 = vsel %vm582, %v583, %v581
        %v585 = vclz %v584
        %v586 = vsub.s32 %v585, 2
        %vm587 = vcmp.gt.s32.totalorder 0, %v586
        %v588 = vsel %vm587, 0, %v586
        %v589 = vsub.s32 32, %v588
        %v590 = vshll.u32 %v581, %v588
        %v591 = vshrl.u32 %v573, %v589
        %v592 = vor.u32 %v590, %v591
        %v593 = vsub.s32 4294967266, %v588
        %v594 = vadd.s32 %v593, 127
        %v595 = vshll.u32 %v594, 23
        %v596 = vor.u32 4788187, %v595
        %v597 = vand.u32 2147483647, %v596
        %v599 = vcvt.s32.f32 %v592
        %v600 = vmul.f32 %v599, %v597
        %v601 = vxor.u32 %v600, 2147483648
        %v602 = vsel %vm481, %v601, %v600
        %v603 = vsub.s32 4, %v579
        %v604 = vsel %vm481, %v603, %v579
        %v605 = vsel %vm480, %v468, %v602
        %v606 = vsel %vm480, 0, %v604
        %v607 = vmul.f32 %v605, %v605
        %v608 = vmul.f32 %v607, -0.001358992
        %v609 = vadd.f32 %v608, 0.041655596
        %v610 = vmul.f32 %v607, %v609
        %v611 = vadd.f32 %v610, -0.4999988
        %v612 = vmul.f32 %v607, %v611
        %v613 = vadd.f32 1.0, %v612
        %v614 = vmul.f32 %v605, %v605
        %v615 = vmul.f32 %v614, -0.00019511016
        %v616 = vadd.f32 %v615, 0.008332121
        %v617 = vmul.f32 %v614, %v616
        %v618 = vadd.f32 %v617, -0.16666654
        %v619 = vmul.f32 %v614, %v618
        %v620 = vadd.f32 %v619, 1.0
        %v621 = vmul.f32 %v620, %v605
        %vm622 = vweird.f32 %v468
        %v623 = vadd.s32 %v606, 3
        %v624 = vand.u32 %v623, 3
        %vm625 = vcmp.lt.s32.totalorder %v624, 2
        %vm626 = vcmp.eq.s32.totalorder %v624, 0
        %v627 = vxor.u32 %v621, 2147483648
        %v628 = vsel %vm626, %v613, %v627
        %vm629 = vcmp.eq.s32.totalorder %v624, 2
        %v630 = vxor.u32 %v613, 2147483648
        %v631 = vsel %vm629, %v630, %v621
        %v632 = vsel %vm625, %v628, %v631
        %v633 = vsel %vm622, nan, %v632
        %v634 = vand.u32 2147483647, %v471
        %vm635 = vcmp.le.f32.partialorder %v634, 0.7853982
        %vm636 = vcmp.lt.s32.totalorder %v471, 0
        %v637 = vand.u32 %v471, 2139095040
        %v638 = vshrl.u32 %v637, 23
        %v639 = vsub.s32 %v638, 127
        %v640 = vand.u32 2147483647, %v471
        %v641 = vand.u32 %v640, 8388607
        %v642 = vor.u32 %v641, 8388608
        %v643 = vsub.s32 0, %v642
        %v644 = vadd.s32 %v639, 1
        %vm645 = vcmp.gt.s32.totalorder %v644, 0
        %v646 = vsel %vm645, %v644, 0
        %v647 = vshrl.u32 %v646, 5
        %v648 = vand.u32 %v646, 31
        %v649 = vsub.s32 32, %v648
        %v650 = vshrl.u32 683565275, %v649
        %v651 = vshll.u32 683565275, %v648
        %v652 = vshrl.u32 2475754826, %v649
        %v653 = vor.u32 %v651, %v652
        %v654 = vshll.u32 2475754826, %v648
        %v655 = vshrl.u32 2131351028, %v649
        %v656 = vor.u32 %v654, %v655
        %v657 = vshll.u32 2131351028, %v648
        %v658 = vshrl.u32 2102212464, %v649
        %v659 = vor.u32 %v657, %v658
        %v660 = vshll.u32 2102212464, %v648
        %v661 = vshrl.u32 920167782, %v649
        %v662 = vor.u32 %v660, %v661
        %v663 = vshll.u32 920167782, %v648
        %v664 = vshrl.u32 1326507024, %v649
        %v665 = vor.u32 %v663, %v664
        %vm666 = vcmp.lt.s32.totalorder %v647, 1
        %vm667 = vcmp.lt.s32.totalorder %v647, 2
        %vm668 = vcmp.lt.s32.totalorder %v647, 3
        %vm669 = vcmp.lt.s32.totalorder %v647, 4
        %v670 = vsel %vm666, %v650, %v653
        %v671 = vsel %vm669, %v659, 2102212464
        %v672 = vsel %vm668, %v656, %v671
        %v673 = vsel %vm667, %v670, %v672
        %v674 = vsel %vm666, %v653, %v656
        %v675 = vsel %vm669, %v662, 920167782
        %v676 = vsel %vm668, %v659, %v675
        %v677 = vsel %vm667, %v674, %v676
        %v678 = vsel %vm666, %v656, %v659
        %v679 = vsel %vm669, %v665, 1326507024
        %v680 = vsel %vm668, %v662, %v679
        %v681 = vsel %vm667, %v678, %v680
        %v682 = vshll.u32 %v642, 8
        %v683 = vand.u32 %v682, 65535
        %v684 = vshrl.u32 %v682, 16
        %v685 = vand.u32 %v681, 65535
        %v686 = vshrl.u32 %v681, 16
        %v687 = vmul.u32 %v683, %v685
        %v688 = vmul.u32 %v683, %v686
        %v689 = vmul.u32 %v684, %v685
        %v690 = vmul.u32 %v684, %v686
        %v691 = vshll.u32 %v688, 16
        %v692 = vshrl.u32 %v688, 16
        %v693 = vshll.u32 %v689, 16
        %v694 = vshrl.u32 %v689, 16
        %vm695 = vc.u32 %v687, %v691
        %v696 = vsel %vm695, 1, 0
        %v697 = vadd.s32 %v687, %v691
        %v698 = vadd.s32 %v690, %v696
        %vm699 = vc.u32 %v697, %v693
        %v700 = vsel %vm699, 1, 0
        %v701 = vadd.s32 %v697, %v693
        %v702 = vadd.s32 %v698, %v700
        %v703 = vadd.s32 %v702, %v692
        %v704 = vadd.s32 %v703, %v694
        %v705 = vand.u32 %v682, 65535
        %v706 = vshrl.u32 %v682, 16
        %v707 = vand.u32 %v677, 65535
        %v708 = vshrl.u32 %v677, 16
        %v709 = vmul.u32 %v705, %v707
        %v710 = vmul.u32 %v705, %v708
        %v711 = vmul.u32 %v706, %v707
        %v712 = vmul.u32 %v706, %v708
        %v713 = vshll.u32 %v710, 16
        %v714 = vshrl.u32 %v710, 16
        %v715 = vshll.u32 %v711, 16
        %v716 = vshrl.u32 %v711, 16
        %vm717 = vc.u32 %v709, %v713
        %v718 = vsel %vm717, 1, 0
        %v719 = vadd.s32 %v709, %v713
        %v720 = vadd.s32 %v712, %v718
        %vm721 = vc.u32 %v719, %v715
        %v722 = vsel %vm721, 1, 0
        %v723 = vadd.s32 %v719, %v715
        %v724 = vadd.s32 %v720, %v722
        %v725 = vadd.s32 %v724, %v714
        %v726 = vadd.s32 %v725, %v716
        %v727 = vmul.u32 %v682, %v673
        %v728 = vadd.s32 %v704, %v723
        %vm729 = vc.u32 %v704, %v723
        %v730 = vadd.s32 %v726, 1
        %v731 = vsel %vm729, %v730, %v726
        %v732 = vadd.s32 %v727, %v731
        %v733 = vadd.s32 %v732, 536870912
        %v734 = vshrl.u32 %v733, 30
        %v735 = vshll.u32 %v734, 30
        %v736 = vsub.s32 %v732, %v735
        %vm737 = vcmp.lt.s32.totalorder %v736, 0
        %v738 = vsub.s32 0, %v736
        %v739 = vsel %vm737, %v738, %v736
        %v740 = vclz %v739
        %v741 = vsub.s32 %v740, 2
        %vm742 = vcmp.gt.s32.totalorder 0, %v741
        %v743 = vsel %vm742, 0, %v741
        %v744 = vsub.s32 32, %v743
        %v745 = vshll.u32 %v736, %v743
        %v746 = vshrl.u32 %v728, %v744
        %v747 = vor.u32 %v745, %v746
        %v748 = vsub.s32 4294967266, %v743
        %v749 = vadd.s32 %v748, 127
        %v750 = vshll.u32 %v749, 23
        %v751 = vor.u32 4788187, %v750
        %v752 = vand.u32 2147483647, %v751
        %v754 = vcvt.s32.f32 %v747
        %v755 = vmul.f32 %v754, %v752
        %v756 = vxor.u32 %v755, 2147483648
        %v757 = vsel %vm636, %v756, %v755
        %v758 = vsub.s32 4, %v734
        %v759 = vsel %vm636, %v758, %v734
        %v760 = vsel %vm635, %v471, %v757
        %v761 = vsel %vm635, 0, %v759
        %v762 = vmul.f32 %v760, %v760
        %v763 = vmul.f32 %v762, -0.001358992
        %v764 = vadd.f32 %v763, 0.041655596
        %v765 = vmul.f32 %v762, %v764
        %v766 = vadd.f32 %v765, -0.4999988
        %v767 = vmul.f32 %v762, %v766
        %v768 = vadd.f32 1.0, %v767
        %v769 = vmul.f32 %v760, %v760
        %v770 = vmul.f32 %v769, -0.00019511016
        %v771 = vadd.f32 %v770, 0.008332121
        %v772 = vmul.f32 %v769, %v771
        %v773 = vadd.f32 %v772, -0.16666654
        %v774 = vmul.f32 %v769, %v773
        %v775 = vadd.f32 %v774, 1.0
        %v776 = vmul.f32 %v775, %v760
        %vm777 = vweird.f32 %v471
        %v778 = vadd.s32 %v761, 3
        %v779 = vand.u32 %v778, 3
        %vm780 = vcmp.lt.s32.totalorder %v779, 2
        %vm781 = vcmp.eq.s32.totalorder %v779, 0
        %v782 = vxor.u32 %v776, 2147483648
        %v783 = vsel %vm781, %v768, %v782
        %vm784 = vcmp.eq.s32.totalorder %v779, 2
        %v785 = vxor.u32 %v768, 2147483648
        %v786 = vsel %vm784, %v785, %v776
        %v787 = vsel %vm780, %v783, %v786
        %v788 = vsel %vm777, nan, %v787
        %v789 = vand.u32 2147483647, %v474
        %vm790 = vcmp.le.f32.partialorder %v789, 0.7853982
        %vm791 = vcmp.lt.s32.totalorder %v474, 0
        %v792 = vand.u32 %v474, 2139095040
        %v793 = vshrl.u32 %v792, 23
        %v794 = vsub.s32 %v793, 127
        %v795 = vand.u32 2147483647, %v474
        %v796 = vand.u32 %v795, 8388607
        %v797 = vor.u32 %v796, 8388608
        %v798 = vsub.s32 0, %v797
        %v799 = vadd.s32 %v794, 1
        %vm800 = vcmp.gt.s32.totalorder %v799, 0
        %v801 = vsel %vm800, %v799, 0
        %v802 = vshrl.u32 %v801, 5
        %v803 = vand.u32 %v801, 31
        %v804 = vsub.s32 32, %v803
        %v805 = vshrl.u32 683565275, %v804
        %v806 = vshll.u32 683565275, %v803
        %v807 = vshrl.u32 2475754826, %v804
        %v808 = vor.u32 %v806, %v807
        %v809 = vshll.u32 2475754826, %v803
        %v810 = vshrl.u32 2131351028, %v804
        %v811 = vor.u32 %v809, %v810
        %v812 = vshll.u32 2131351028, %v803
        %v813 = vshrl.u32 2102212464, %v804
        %v814 = vor.u32 %v812, %v813
        %v815 = vshll.u32 2102212464, %v803
        %v816 = vshrl.u32 920167782, %v804
        %v817 = vor.u32 %v815, %v816
        %v818 = vshll.u32 920167782, %v803
        %v819 = vshrl.u32 1326507024, %v804
        %v820 = vor.u32 %v818, %v819
        %vm821 = vcmp.lt.s32.totalorder %v802, 1
        %vm822 = vcmp.lt.s32.totalorder %v802, 2
        %vm823 = vcmp.lt.s32.totalorder %v802, 3
        %vm824 = vcmp.lt.s32.totalorder %v802, 4
        %v825 = vsel %vm821, %v805, %v808
        %v826 = vsel %vm824, %v814, 2102212464
        %v827 = vsel %vm823, %v811, %v826
        %v828 = vsel %vm822, %v825, %v827
        %v829 = vsel %vm821, %v808, %v811
        %v830 = vsel %vm824, %v817, 920167782
        %v831 = vsel %vm823, %v814, %v830
        %v832 = vsel %vm822, %v829, %v831
        %v833 = vsel %vm821, %v811, %v814
        %v834 = vsel %vm824, %v820, 1326507024
        %v835 = vsel %vm823, %v817, %v834
        %v836 = vsel %vm822, %v833, %v835
        %v837 = vshll.u32 %v797, 8
        %v838 = vand.u32 %v837, 65535
        %v839 = vshrl.u32 %v837, 16
        %v840 = vand.u32 %v836, 65535
        %v841 = vshrl.u32 %v836, 16
        %v842 = vmul.u32 %v838, %v840
        %v843 = vmul.u32 %v838, %v841
        %v844 = vmul.u32 %v839, %v840
        %v845 = vmul.u32 %v839, %v841
        %v846 = vshll.u32 %v843, 16
        %v847 = vshrl.u32 %v843, 16
        %v848 = vshll.u32 %v844, 16
        %v849 = vshrl.u32 %v844, 16
        %vm850 = vc.u32 %v842, %v846
        %v851 = vsel %vm850, 1, 0
        %v852 = vadd.s32 %v842, %v846
        %v853 = vadd.s32 %v845, %v851
        %vm854 = vc.u32 %v852, %v848
        %v855 = vsel %vm854, 1, 0
        %v856 = vadd.s32 %v852, %v848
        %v857 = vadd.s32 %v853, %v855
        %v858 = vadd.s32 %v857, %v847
        %v859 = vadd.s32 %v858, %v849
        %v860 = vand.u32 %v837, 65535
        %v861 = vshrl.u32 %v837, 16
        %v862 = vand.u32 %v832, 65535
        %v863 = vshrl.u32 %v832, 16
        %v864 = vmul.u32 %v860, %v862
        %v865 = vmul.u32 %v860, %v863
        %v866 = vmul.u32 %v861, %v862
        %v867 = vmul.u32 %v861, %v863
        %v868 = vshll.u32 %v865, 16
        %v869 = vshrl.u32 %v865, 16
        %v870 = vshll.u32 %v866, 16
        %v871 = vshrl.u32 %v866, 16
        %vm872 = vc.u32 %v864, %v868
        %v873 = vsel %vm872, 1, 0
        %v874 = vadd.s32 %v864, %v868
        %v875 = vadd.s32 %v867, %v873
        %vm876 = vc.u32 %v874, %v870
        %v877 = vsel %vm876, 1, 0
        %v878 = vadd.s32 %v874, %v870
        %v879 = vadd.s32 %v875, %v877
        %v880 = vadd.s32 %v879, %v869
        %v881 = vadd.s32 %v880, %v871
        %v882 = vmul.u32 %v837, %v828
        %v883 = vadd.s32 %v859, %v878
        %vm884 = vc.u32 %v859, %v878
        %v885 = vadd.s32 %v881, 1
        %v886 = vsel %vm884, %v885, %v881
        %v887 = vadd.s32 %v882, %v886
        %v888 = vadd.s32 %v887, 536870912
        %v889 = vshrl.u32 %v888, 30
        %v890 = vshll.u32 %v889, 30
        %v891 = vsub.s32 %v887, %v890
        %vm892 = vcmp.lt.s32.totalorder %v891, 0
        %v893 = vsub.s32 0, %v891
        %v894 = vsel %vm892, %v893, %v891
        %v895 = vclz %v894
        %v896 = vsub.s32 %v895, 2
        %vm897 = vcmp.gt.s32.totalorder 0, %v896
        %v898 = vsel %vm897, 0, %v896
        %v899 = vsub.s32 32, %v898
        %v900 = vshll.u32 %v891, %v898
        %v901 = vshrl.u32 %v883, %v899
        %v902 = vor.u32 %v900, %v901
        %v903 = vsub.s32 4294967266, %v898
        %v904 = vadd.s32 %v903, 127
        %v905 = vshll.u32 %v904, 23
        %v906 = vor.u32 4788187, %v905
        %v907 = vand.u32 2147483647, %v906
        %v909 = vcvt.s32.f32 %v902
        %v910 = vmul.f32 %v909, %v907
        %v911 = vxor.u32 %v910, 2147483648
        %v912 = vsel %vm791, %v911, %v910
        %v913 = vsub.s32 4, %v889
        %v914 = vsel %vm791, %v913, %v889
        %v915 = vsel %vm790, %v474, %v912
        %v916 = vsel %vm790, 0, %v914
        %v917 = vmul.f32 %v915, %v915
        %v918 = vmul.f32 %v917, -0.001358992
        %v919 = vadd.f32 %v918, 0.041655596
        %v920 = vmul.f32 %v917, %v919
        %v921 = vadd.f32 %v920, -0.4999988
        %v922 = vmul.f32 %v917, %v921
        %v923 = vadd.f32 1.0, %v922
        %v924 = vmul.f32 %v915, %v915
        %v925 = vmul.f32 %v924, -0.00019511016
        %v926 = vadd.f32 %v925, 0.008332121
        %v927 = vmul.f32 %v924, %v926
        %v928 = vadd.f32 %v927, -0.16666654
        %v929 = vmul.f32 %v924, %v928
        %v930 = vadd.f32 %v929, 1.0
        %v931 = vmul.f32 %v930, %v915
        %vm932 = vweird.f32 %v474
        %v933 = vadd.s32 %v916, 3
        %v934 = vand.u32 %v933, 3
        %vm935 = vcmp.lt.s32.totalorder %v934, 2
        %vm936 = vcmp.eq.s32.totalorder %v934, 0
        %v937 = vxor.u32 %v931, 2147483648
        %v938 = vsel %vm936, %v923, %v937
        %vm939 = vcmp.eq.s32.totalorder %v934, 2
        %v940 = vxor.u32 %v923, 2147483648
        %v941 = vsel %vm939, %v940, %v931
        %v942 = vsel %vm935, %v938, %v941
        %v943 = vsel %vm932, nan, %v942
        %v944 = vand.u32 2147483647, %v477
        %vm945 = vcmp.le.f32.partialorder %v944, 0.7853982
        %vm946 = vcmp.lt.s32.totalorder %v477, 0
        %v947 = vand.u32 %v477, 2139095040
        %v948 = vshrl.u32 %v947, 23
        %v949 = vsub.s32 %v948, 127
        %v950 = vand.u32 2147483647, %v477
        %v951 = vand.u32 %v950, 8388607
        %v952 = vor.u32 %v951, 8388608
        %v953 = vsub.s32 0, %v952
        %v954 = vadd.s32 %v949, 1
        %vm955 = vcmp.gt.s32.totalorder %v954, 0
        %v956 = vsel %vm955, %v954, 0
        %v957 = vshrl.u32 %v956, 5
        %v958 = vand.u32 %v956, 31
        %v959 = vsub.s32 32, %v958
        %v960 = vshrl.u32 683565275, %v959
        %v961 = vshll.u32 683565275, %v958
        %v962 = vshrl.u32 2475754826, %v959
        %v963 = vor.u32 %v961, %v962
        %v964 = vshll.u32 2475754826, %v958
        %v965 = vshrl.u32 2131351028, %v959
        %v966 = vor.u32 %v964, %v965
        %v967 = vshll.u32 2131351028, %v958
        %v968 = vshrl.u32 2102212464, %v959
        %v969 = vor.u32 %v967, %v968
        %v970 = vshll.u32 2102212464, %v958
        %v971 = vshrl.u32 920167782, %v959
        %v972 = vor.u32 %v970, %v971
        %v973 = vshll.u32 920167782, %v958
        %v974 = vshrl.u32 1326507024, %v959
        %v975 = vor.u32 %v973, %v974
        %vm976 = vcmp.lt.s32.totalorder %v957, 1
        %vm977 = vcmp.lt.s32.totalorder %v957, 2
        %vm978 = vcmp.lt.s32.totalorder %v957, 3
        %vm979 = vcmp.lt.s32.totalorder %v957, 4
        %v980 = vsel %vm976, %v960, %v963
        %v981 = vsel %vm979, %v969, 2102212464
        %v982 = vsel %vm978, %v966, %v981
        %v983 = vsel %vm977, %v980, %v982
        %v984 = vsel %vm976, %v963, %v966
        %v985 = vsel %vm979, %v972, 920167782
        %v986 = vsel %vm978, %v969, %v985
        %v987 = vsel %vm977, %v984, %v986
        %v988 = vsel %vm976, %v966, %v969
        %v989 = vsel %vm979, %v975, 1326507024
        %v990 = vsel %vm978, %v972, %v989
        %v991 = vsel %vm977, %v988, %v990
        %v992 = vshll.u32 %v952, 8
        %v993 = vand.u32 %v992, 65535
        %v994 = vshrl.u32 %v992, 16
        %v995 = vand.u32 %v991, 65535
        %v996 = vshrl.u32 %v991, 16
        %v997 = vmul.u32 %v993, %v995
        %v998 = vmul.u32 %v993, %v996
        %v999 = vmul.u32 %v994, %v995
        %v1000 = vmul.u32 %v994, %v996
        %v1001 = vshll.u32 %v998, 16
        %v1002 = vshrl.u32 %v998, 16
        %v1003 = vshll.u32 %v999, 16
        %v1004 = vshrl.u32 %v999, 16
        %vm1005 = vc.u32 %v997, %v1001
        %v1006 = vsel %vm1005, 1, 0
        %v1007 = vadd.s32 %v997, %v1001
        %v1008 = vadd.s32 %v1000, %v1006
        %vm1009 = vc.u32 %v1007, %v1003
        %v1010 = vsel %vm1009, 1, 0
        %v1011 = vadd.s32 %v1007, %v1003
        %v1012 = vadd.s32 %v1008, %v1010
        %v1013 = vadd.s32 %v1012, %v1002
        %v1014 = vadd.s32 %v1013, %v1004
        %v1015 = vand.u32 %v992, 65535
        %v1016 = vshrl.u32 %v992, 16
        %v1017 = vand.u32 %v987, 65535
        %v1018 = vshrl.u32 %v987, 16
        %v1019 = vmul.u32 %v1015, %v1017
        %v1020 = vmul.u32 %v1015, %v1018
        %v1021 = vmul.u32 %v1016, %v1017
        %v1022 = vmul.u32 %v1016, %v1018
        %v1023 = vshll.u32 %v1020, 16
        %v1024 = vshrl.u32 %v1020, 16
        %v1025 = vshll.u32 %v1021, 16
        %v1026 = vshrl.u32 %v1021, 16
        %vm1027 = vc.u32 %v1019, %v1023
        %v1028 = vsel %vm1027, 1, 0
        %v1029 = vadd.s32 %v1019, %v1023
        %v1030 = vadd.s32 %v1022, %v1028
        %vm1031 = vc.u32 %v1029, %v1025
        %v1032 = vsel %vm1031, 1, 0
        %v1033 = vadd.s32 %v1029, %v1025
        %v1034 = vadd.s32 %v1030, %v1032
        %v1035 = vadd.s32 %v1034, %v1024
        %v1036 = vadd.s32 %v1035, %v1026
        %v1037 = vmul.u32 %v992, %v983
        %v1038 = vadd.s32 %v1014, %v1033
        %vm1039 = vc.u32 %v1014, %v1033
        %v1040 = vadd.s32 %v1036, 1
        %v1041 = vsel %vm1039, %v1040, %v1036
        %v1042 = vadd.s32 %v1037, %v1041
        %v1043 = vadd.s32 %v1042, 536870912
        %v1044 = vshrl.u32 %v1043, 30
        %v1045 = vshll.u32 %v1044, 30
        %v1046 = vsub.s32 %v1042, %v1045
        %vm1047 = vcmp.lt.s32.totalorder %v1046, 0
        %v1048 = vsub.s32 0, %v1046
        %v1049 = vsel %vm1047, %v1048, %v1046
        %v1050 = vclz %v1049
        %v1051 = vsub.s32 %v1050, 2
        %vm1052 = vcmp.gt.s32.totalorder 0, %v1051
        %v1053 = vsel %vm1052, 0, %v1051
        %v1054 = vsub.s32 32, %v1053
        %v1055 = vshll.u32 %v1046, %v1053
        %v1056 = vshrl.u32 %v1038, %v1054
        %v1057 = vor.u32 %v1055, %v1056
        %v1058 = vsub.s32 4294967266, %v1053
        %v1059 = vadd.s32 %v1058, 127
        %v1060 = vshll.u32 %v1059, 23
        %v1061 = vor.u32 4788187, %v1060
        %v1062 = vand.u32 2147483647, %v1061
        %v1064 = vcvt.s32.f32 %v1057
        %v1065 = vmul.f32 %v1064, %v1062
        %v1066 = vxor.u32 %v1065, 2147483648
        %v1067 = vsel %vm946, %v1066, %v1065
        %v1068 = vsub.s32 4, %v1044
        %v1069 = vsel %vm946, %v1068, %v1044
        %v1070 = vsel %vm945, %v477, %v1067
        %v1071 = vsel %vm945, 0, %v1069
        %v1072 = vmul.f32 %v1070, %v1070
        %v1073 = vmul.f32 %v1072, -0.001358992
        %v1074 = vadd.f32 %v1073, 0.041655596
        %v1075 = vmul.f32 %v1072, %v1074
        %v1076 = vadd.f32 %v1075, -0.4999988
        %v1077 = vmul.f32 %v1072, %v1076
        %v1078 = vadd.f32 1.0, %v1077
        %v1079 = vmul.f32 %v1070, %v1070
        %v1080 = vmul.f32 %v1079, -0.00019511016
        %v1081 = vadd.f32 %v1080, 0.008332121
        %v1082 = vmul.f32 %v1079, %v1081
        %v1083 = vadd.f32 %v1082, -0.16666654
        %v1084 = vmul.f32 %v1079, %v1083
        %v1085 = vadd.f32 %v1084, 1.0
        %v1086 = vmul.f32 %v1085, %v1070
        %vm1087 = vweird.f32 %v477
        %v1088 = vadd.s32 %v1071, 3
        %v1089 = vand.u32 %v1088, 3
        %vm1090 = vcmp.lt.s32.totalorder %v1089, 2
        %vm1091 = vcmp.eq.s32.totalorder %v1089, 0
        %v1092 = vxor.u32 %v1086, 2147483648
        %v1093 = vsel %vm1091, %v1078, %v1092
        %vm1094 = vcmp.eq.s32.totalorder %v1089, 2
        %v1095 = vxor.u32 %v1078, 2147483648
        %v1096 = vsel %vm1094, %v1095, %v1086
        %v1097 = vsel %vm1090, %v1093, %v1096
        %v1098 = vsel %vm1087, nan, %v1097
        %v1099 = vand.u32 2147483647, %v468
        %vm1100 = vcmp.le.f32.partialorder %v1099, 0.7853982
        %vm1101 = vcmp.lt.s32.totalorder %v468, 0
        %v1102 = vand.u32 %v468, 2139095040
        %v1103 = vshrl.u32 %v1102, 23
        %v1104 = vsub.s32 %v1103, 127
        %v1105 = vand.u32 2147483647, %v468
        %v1106 = vand.u32 %v1105, 8388607
        %v1107 = vor.u32 %v1106, 8388608
        %v1108 = vsub.s32 0, %v1107
        %v1109 = vadd.s32 %v1104, 1
        %vm1110 = vcmp.gt.s32.totalorder %v1109, 0
        %v1111 = vsel %vm1110, %v1109, 0
        %v1112 = vshrl.u32 %v1111, 5
        %v1113 = vand.u32 %v1111, 31
        %v1114 = vsub.s32 32, %v1113
        %v1115 = vshrl.u32 683565275, %v1114
        %v1116 = vshll.u32 683565275, %v1113
        %v1117 = vshrl.u32 2475754826, %v1114
        %v1118 = vor.u32 %v1116, %v1117
        %v1119 = vshll.u32 2475754826, %v1113
        %v1120 = vshrl.u32 2131351028, %v1114
        %v1121 = vor.u32 %v1119, %v1120
        %v1122 = vshll.u32 2131351028, %v1113
        %v1123 = vshrl.u32 2102212464, %v1114
        %v1124 = vor.u32 %v1122, %v1123
        %v1125 = vshll.u32 2102212464, %v1113
        %v1126 = vshrl.u32 920167782, %v1114
        %v1127 = vor.u32 %v1125, %v1126
        %v1128 = vshll.u32 920167782, %v1113
        %v1129 = vshrl.u32 1326507024, %v1114
        %v1130 = vor.u32 %v1128, %v1129
        %vm1131 = vcmp.lt.s32.totalorder %v1112, 1
        %vm1132 = vcmp.lt.s32.totalorder %v1112, 2
        %vm1133 = vcmp.lt.s32.totalorder %v1112, 3
        %vm1134 = vcmp.lt.s32.totalorder %v1112, 4
        %v1135 = vsel %vm1131, %v1115, %v1118
        %v1136 = vsel %vm1134, %v1124, 2102212464
        %v1137 = vsel %vm1133, %v1121, %v1136
        %v1138 = vsel %vm1132, %v1135, %v1137
        %v1139 = vsel %vm1131, %v1118, %v1121
        %v1140 = vsel %vm1134, %v1127, 920167782
        %v1141 = vsel %vm1133, %v1124, %v1140
        %v1142 = vsel %vm1132, %v1139, %v1141
        %v1143 = vsel %vm1131, %v1121, %v1124
        %v1144 = vsel %vm1134, %v1130, 1326507024
        %v1145 = vsel %vm1133, %v1127, %v1144
        %v1146 = vsel %vm1132, %v1143, %v1145
        %v1147 = vshll.u32 %v1107, 8
        %v1148 = vand.u32 %v1147, 65535
        %v1149 = vshrl.u32 %v1147, 16
        %v1150 = vand.u32 %v1146, 65535
        %v1151 = vshrl.u32 %v1146, 16
        %v1152 = vmul.u32 %v1148, %v1150
        %v1153 = vmul.u32 %v1148, %v1151
        %v1154 = vmul.u32 %v1149, %v1150
        %v1155 = vmul.u32 %v1149, %v1151
        %v1156 = vshll.u32 %v1153, 16
        %v1157 = vshrl.u32 %v1153, 16
        %v1158 = vshll.u32 %v1154, 16
        %v1159 = vshrl.u32 %v1154, 16
        %vm1160 = vc.u32 %v1152, %v1156
        %v1161 = vsel %vm1160, 1, 0
        %v1162 = vadd.s32 %v1152, %v1156
        %v1163 = vadd.s32 %v1155, %v1161
        %vm1164 = vc.u32 %v1162, %v1158
        %v1165 = vsel %vm1164, 1, 0
        %v1166 = vadd.s32 %v1162, %v1158
        %v1167 = vadd.s32 %v1163, %v1165
        %v1168 = vadd.s32 %v1167, %v1157
        %v1169 = vadd.s32 %v1168, %v1159
        %v1170 = vand.u32 %v1147, 65535
        %v1171 = vshrl.u32 %v1147, 16
        %v1172 = vand.u32 %v1142, 65535
        %v1173 = vshrl.u32 %v1142, 16
        %v1174 = vmul.u32 %v1170, %v1172
        %v1175 = vmul.u32 %v1170, %v1173
        %v1176 = vmul.u32 %v1171, %v1172
        %v1177 = vmul.u32 %v1171, %v1173
        %v1178 = vshll.u32 %v1175, 16
        %v1179 = vshrl.u32 %v1175, 16
        %v1180 = vshll.u32 %v1176, 16
        %v1181 = vshrl.u32 %v1176, 16
        %vm1182 = vc.u32 %v1174, %v1178
        %v1183 = vsel %vm1182, 1, 0
        %v1184 = vadd.s32 %v1174, %v1178
        %v1185 = vadd.s32 %v1177, %v1183
        %vm1186 = vc.u32 %v1184, %v1180
        %v1187 = vsel %vm1186, 1, 0
        %v1188 = vadd.s32 %v1184, %v1180
        %v1189 = vadd.s32 %v1185, %v1187
        %v1190 = vadd.s32 %v1189, %v1179
        %v1191 = vadd.s32 %v1190, %v1181
        %v1192 = vmul.u32 %v1147, %v1138
        %v1193 = vadd.s32 %v1169, %v1188
        %vm1194 = vc.u32 %v1169, %v1188
        %v1195 = vadd.s32 %v1191, 1
        %v1196 = vsel %vm1194, %v1195, %v1191
        %v1197 = vadd.s32 %v1192, %v1196
        %v1198 = vadd.s32 %v1197, 536870912
        %v1199 = vshrl.u32 %v1198, 30
        %v1200 = vshll.u32 %v1199, 30
        %v1201 = vsub.s32 %v1197, %v1200
        %vm1202 = vcmp.lt.s32.totalorder %v1201, 0
        %v1203 = vsub.s32 0, %v1201
        %v1204 = vsel %vm1202, %v1203, %v1201
        %v1205 = vclz %v1204
        %v1206 = vsub.s32 %v1205, 2
        %vm1207 = vcmp.gt.s32.totalorder 0, %v1206
        %v1208 = vsel %vm1207, 0, %v1206
        %v1209 = vsub.s32 32, %v1208
        %v1210 = vshll.u32 %v1201, %v1208
        %v1211 = vshrl.u32 %v1193, %v1209
        %v1212 = vor.u32 %v1210, %v1211
        %v1213 = vsub.s32 4294967266, %v1208
        %v1214 = vadd.s32 %v1213, 127
        %v1215 = vshll.u32 %v1214, 23
        %v1216 = vor.u32 4788187, %v1215
        %v1217 = vand.u32 2147483647, %v1216
        %v1219 = vcvt.s32.f32 %v1212
        %v1220 = vmul.f32 %v1219, %v1217
        %v1221 = vxor.u32 %v1220, 2147483648
        %v1222 = vsel %vm1101, %v1221, %v1220
        %v1223 = vsub.s32 4, %v1199
        %v1224 = vsel %vm1101, %v1223, %v1199
        %v1225 = vsel %vm1100, %v468, %v1222
        %v1226 = vsel %vm1100, 0, %v1224
        %v1227 = vmul.f32 %v1225, %v1225
        %v1228 = vmul.f32 %v1227, -0.001358992
        %v1229 = vadd.f32 %v1228, 0.041655596
        %v1230 = vmul.f32 %v1227, %v1229
        %v1231 = vadd.f32 %v1230, -0.4999988
        %v1232 = vmul.f32 %v1227, %v1231
        %v1233 = vadd.f32 1.0, %v1232
        %v1234 = vmul.f32 %v1225, %v1225
        %v1235 = vmul.f32 %v1234, -0.00019511016
        %v1236 = vadd.f32 %v1235, 0.008332121
        %v1237 = vmul.f32 %v1234, %v1236
        %v1238 = vadd.f32 %v1237, -0.16666654
        %v1239 = vmul.f32 %v1234, %v1238
        %v1240 = vadd.f32 %v1239, 1.0
        %v1241 = vmul.f32 %v1240, %v1225
        %vm1242 = vweird.f32 %v468
        %v1243 = vand.u32 %v1226, 3
        %vm1244 = vcmp.lt.s32.totalorder %v1243, 2
        %vm1245 = vcmp.eq.s32.totalorder %v1243, 0
        %v1246 = vxor.u32 %v1241, 2147483648
        %v1247 = vsel %vm1245, %v1233, %v1246
        %vm1248 = vcmp.eq.s32.totalorder %v1243, 2
        %v1249 = vxor.u32 %v1233, 2147483648
        %v1250 = vsel %vm1248, %v1249, %v1241
        %v1251 = vsel %vm1244, %v1247, %v1250
        %v1252 = vsel %vm1242, nan, %v1251
        %v1253 = vand.u32 2147483647, %v471
        %vm1254 = vcmp.le.f32.partialorder %v1253, 0.7853982
        %vm1255 = vcmp.lt.s32.totalorder %v471, 0
        %v1256 = vand.u32 %v471, 2139095040
        %v1257 = vshrl.u32 %v1256, 23
        %v1258 = vsub.s32 %v1257, 127
        %v1259 = vand.u32 2147483647, %v471
        %v1260 = vand.u32 %v1259, 8388607
        %v1261 = vor.u32 %v1260, 8388608
        %v1262 = vsub.s32 0, %v1261
        %v1263 = vadd.s32 %v1258, 1
        %vm1264 = vcmp.gt.s32.totalorder %v1263, 0
        %v1265 = vsel %vm1264, %v1263, 0
        %v1266 = vshrl.u32 %v1265, 5
        %v1267 = vand.u32 %v1265, 31
        %v1268 = vsub.s32 32, %v1267
        %v1269 = vshrl.u32 683565275, %v1268
        %v1270 = vshll.u32 683565275, %v1267
        %v1271 = vshrl.u32 2475754826, %v1268
        %v1272 = vor.u32 %v1270, %v1271
        %v1273 = vshll.u32 2475754826, %v1267
        %v1274 = vshrl.u32 2131351028, %v1268
        %v1275 = vor.u32 %v1273, %v1274
        %v1276 = vshll.u32 2131351028, %v1267
        %v1277 = vshrl.u32 2102212464, %v1268
        %v1278 = vor.u32 %v1276, %v1277
        %v1279 = vshll.u32 2102212464, %v1267
        %v1280 = vshrl.u32 920167782, %v1268
        %v1281 = vor.u32 %v1279, %v1280
        %v1282 = vshll.u32 920167782, %v1267
        %v1283 = vshrl.u32 1326507024, %v1268
        %v1284 = vor.u32 %v1282, %v1283
        %vm1285 = vcmp.lt.s32.totalorder %v1266, 1
        %vm1286 = vcmp.lt.s32.totalorder %v1266, 2
        %vm1287 = vcmp.lt.s32.totalorder %v1266, 3
        %vm1288 = vcmp.lt.s32.totalorder %v1266, 4
        %v1289 = vsel %vm1285, %v1269, %v1272
        %v1290 = vsel %vm1288, %v1278, 2102212464
        %v1291 = vsel %vm1287, %v1275, %v1290
        %v1292 = vsel %vm1286, %v1289, %v1291
        %v1293 = vsel %vm1285, %v1272, %v1275
        %v1294 = vsel %vm1288, %v1281, 920167782
        %v1295 = vsel %vm1287, %v1278, %v1294
        %v1296 = vsel %vm1286, %v1293, %v1295
        %v1297 = vsel %vm1285, %v1275, %v1278
        %v1298 = vsel %vm1288, %v1284, 1326507024
        %v1299 = vsel %vm1287, %v1281, %v1298
        %v1300 = vsel %vm1286, %v1297, %v1299
        %v1301 = vshll.u32 %v1261, 8
        %v1302 = vand.u32 %v1301, 65535
        %v1303 = vshrl.u32 %v1301, 16
        %v1304 = vand.u32 %v1300, 65535
        %v1305 = vshrl.u32 %v1300, 16
        %v1306 = vmul.u32 %v1302, %v1304
        %v1307 = vmul.u32 %v1302, %v1305
        %v1308 = vmul.u32 %v1303, %v1304
        %v1309 = vmul.u32 %v1303, %v1305
        %v1310 = vshll.u32 %v1307, 16
        %v1311 = vshrl.u32 %v1307, 16
        %v1312 = vshll.u32 %v1308, 16
        %v1313 = vshrl.u32 %v1308, 16
        %vm1314 = vc.u32 %v1306, %v1310
        %v1315 = vsel %vm1314, 1, 0
        %v1316 = vadd.s32 %v1306, %v1310
        %v1317 = vadd.s32 %v1309, %v1315
        %vm1318 = vc.u32 %v1316, %v1312
        %v1319 = vsel %vm1318, 1, 0
        %v1320 = vadd.s32 %v1316, %v1312
        %v1321 = vadd.s32 %v1317, %v1319
        %v1322 = vadd.s32 %v1321, %v1311
        %v1323 = vadd.s32 %v1322, %v1313
        %v1324 = vand.u32 %v1301, 65535
        %v1325 = vshrl.u32 %v1301, 16
        %v1326 = vand.u32 %v1296, 65535
        %v1327 = vshrl.u32 %v1296, 16
        %v1328 = vmul.u32 %v1324, %v1326
        %v1329 = vmul.u32 %v1324, %v1327
        %v1330 = vmul.u32 %v1325, %v1326
        %v1331 = vmul.u32 %v1325, %v1327
        %v1332 = vshll.u32 %v1329, 16
        %v1333 = vshrl.u32 %v1329, 16
        %v1334 = vshll.u32 %v1330, 16
        %v1335 = vshrl.u32 %v1330, 16
        %vm1336 = vc.u32 %v1328, %v1332
        %v1337 = vsel %vm1336, 1, 0
        %v1338 = vadd.s32 %v1328, %v1332
        %v1339 = vadd.s32 %v1331, %v1337
        %vm1340 = vc.u32 %v1338, %v1334
        %v1341 = vsel %vm1340, 1, 0
        %v1342 = vadd.s32 %v1338, %v1334
        %v1343 = vadd.s32 %v1339, %v1341
        %v1344 = vadd.s32 %v1343, %v1333
        %v1345 = vadd.s32 %v1344, %v1335
        %v1346 = vmul.u32 %v1301, %v1292
        %v1347 = vadd.s32 %v1323, %v1342
        %vm1348 = vc.u32 %v1323, %v1342
        %v1349 = vadd.s32 %v1345, 1
        %v1350 = vsel %vm1348, %v1349, %v1345
        %v1351 = vadd.s32 %v1346, %v1350
        %v1352 = vadd.s32 %v1351, 536870912
        %v1353 = vshrl.u32 %v1352, 30
        %v1354 = vshll.u32 %v1353, 30
        %v1355 = vsub.s32 %v1351, %v1354
        %vm1356 = vcmp.lt.s32.totalorder %v1355, 0
        %v1357 = vsub.s32 0, %v1355
        %v1358 = vsel %vm1356, %v1357, %v1355
        %v1359 = vclz %v1358
        %v1360 = vsub.s32 %v1359, 2
        %vm1361 = vcmp.gt.s32.totalorder 0, %v1360
        %v1362 = vsel %vm1361, 0, %v1360
        %v1363 = vsub.s32 32, %v1362
        %v1364 = vshll.u32 %v1355, %v1362
        %v1365 = vshrl.u32 %v1347, %v1363
        %v1366 = vor.u32 %v1364, %v1365
        %v1367 = vsub.s32 4294967266, %v1362
        %v1368 = vadd.s32 %v1367, 127
        %v1369 = vshll.u32 %v1368, 23
        %v1370 = vor.u32 4788187, %v1369
        %v1371 = vand.u32 2147483647, %v1370
        %v1373 = vcvt.s32.f32 %v1366
        %v1374 = vmul.f32 %v1373, %v1371
        %v1375 = vxor.u32 %v1374, 2147483648
        %v1376 = vsel %vm1255, %v1375, %v1374
        %v1377 = vsub.s32 4, %v1353
        %v1378 = vsel %vm1255, %v1377, %v1353
        %v1379 = vsel %vm1254, %v471, %v1376
        %v1380 = vsel %vm1254, 0, %v1378
        %v1381 = vmul.f32 %v1379, %v1379
        %v1382 = vmul.f32 %v1381, -0.001358992
        %v1383 = vadd.f32 %v1382, 0.041655596
        %v1384 = vmul.f32 %v1381, %v1383
        %v1385 = vadd.f32 %v1384, -0.4999988
        %v1386 = vmul.f32 %v1381, %v1385
        %v1387 = vadd.f32 1.0, %v1386
        %v1388 = vmul.f32 %v1379, %v1379
        %v1389 = vmul.f32 %v1388, -0.00019511016
        %v1390 = vadd.f32 %v1389, 0.008332121
        %v1391 = vmul.f32 %v1388, %v1390
        %v1392 = vadd.f32 %v1391, -0.16666654
        %v1393 = vmul.f32 %v1388, %v1392
        %v1394 = vadd.f32 %v1393, 1.0
        %v1395 = vmul.f32 %v1394, %v1379
        %vm1396 = vweird.f32 %v471
        %v1397 = vand.u32 %v1380, 3
        %vm1398 = vcmp.lt.s32.totalorder %v1397, 2
        %vm1399 = vcmp.eq.s32.totalorder %v1397, 0
        %v1400 = vxor.u32 %v1395, 2147483648
        %v1401 = vsel %vm1399, %v1387, %v1400
        %vm1402 = vcmp.eq.s32.totalorder %v1397, 2
        %v1403 = vxor.u32 %v1387, 2147483648
        %v1404 = vsel %vm1402, %v1403, %v1395
        %v1405 = vsel %vm1398, %v1401, %v1404
        %v1406 = vsel %vm1396, nan, %v1405
        %v1407 = vand.u32 2147483647, %v474
        %vm1408 = vcmp.le.f32.partialorder %v1407, 0.7853982
        %vm1409 = vcmp.lt.s32.totalorder %v474, 0
        %v1410 = vand.u32 %v474, 2139095040
        %v1411 = vshrl.u32 %v1410, 23
        %v1412 = vsub.s32 %v1411, 127
        %v1413 = vand.u32 2147483647, %v474
        %v1414 = vand.u32 %v1413, 8388607
        %v1415 = vor.u32 %v1414, 8388608
        %v1416 = vsub.s32 0, %v1415
        %v1417 = vadd.s32 %v1412, 1
        %vm1418 = vcmp.gt.s32.totalorder %v1417, 0
        %v1419 = vsel %vm1418, %v1417, 0
        %v1420 = vshrl.u32 %v1419, 5
        %v1421 = vand.u32 %v1419, 31
        %v1422 = vsub.s32 32, %v1421
        %v1423 = vshrl.u32 683565275, %v1422
        %v1424 = vshll.u32 683565275, %v1421
        %v1425 = vshrl.u32 2475754826, %v1422
        %v1426 = vor.u32 %v1424, %v1425
        %v1427 = vshll.u32 2475754826, %v1421
        %v1428 = vshrl.u32 2131351028, %v1422
        %v1429 = vor.u32 %v1427, %v1428
        %v1430 = vshll.u32 2131351028, %v1421
        %v1431 = vshrl.u32 2102212464, %v1422
        %v1432 = vor.u32 %v1430, %v1431
        %v1433 = vshll.u32 2102212464, %v1421
        %v1434 = vshrl.u32 920167782, %v1422
        %v1435 = vor.u32 %v1433, %v1434
        %v1436 = vshll.u32 920167782, %v1421
        %v1437 = vshrl.u32 1326507024, %v1422
        %v1438 = vor.u32 %v1436, %v1437
        %vm1439 = vcmp.lt.s32.totalorder %v1420, 1
        %vm1440 = vcmp.lt.s32.totalorder %v1420, 2
        %vm1441 = vcmp.lt.s32.totalorder %v1420, 3
        %vm1442 = vcmp.lt.s32.totalorder %v1420, 4
        %v1443 = vsel %vm1439, %v1423, %v1426
        %v1444 = vsel %vm1442, %v1432, 2102212464
        %v1445 = vsel %vm1441, %v1429, %v1444
        %v1446 = vsel %vm1440, %v1443, %v1445
        %v1447 = vsel %vm1439, %v1426, %v1429
        %v1448 = vsel %vm1442, %v1435, 920167782
        %v1449 = vsel %vm1441, %v1432, %v1448
        %v1450 = vsel %vm1440, %v1447, %v1449
        %v1451 = vsel %vm1439, %v1429, %v1432
        %v1452 = vsel %vm1442, %v1438, 1326507024
        %v1453 = vsel %vm1441, %v1435, %v1452
        %v1454 = vsel %vm1440, %v1451, %v1453
        %v1455 = vshll.u32 %v1415, 8
        %v1456 = vand.u32 %v1455, 65535
        %v1457 = vshrl.u32 %v1455, 16
        %v1458 = vand.u32 %v1454, 65535
        %v1459 = vshrl.u32 %v1454, 16
        %v1460 = vmul.u32 %v1456, %v1458
        %v1461 = vmul.u32 %v1456, %v1459
        %v1462 = vmul.u32 %v1457, %v1458
        %v1463 = vmul.u32 %v1457, %v1459
        %v1464 = vshll.u32 %v1461, 16
        %v1465 = vshrl.u32 %v1461, 16
        %v1466 = vshll.u32 %v1462, 16
        %v1467 = vshrl.u32 %v1462, 16
        %vm1468 = vc.u32 %v1460, %v1464
        %v1469 = vsel %vm1468, 1, 0
        %v1470 = vadd.s32 %v1460, %v1464
        %v1471 = vadd.s32 %v1463, %v1469
        %vm1472 = vc.u32 %v1470, %v1466
        %v1473 = vsel %vm1472, 1, 0
        %v1474 = vadd.s32 %v1470, %v1466
        %v1475 = vadd.s32 %v1471, %v1473
        %v1476 = vadd.s32 %v1475, %v1465
        %v1477 = vadd.s32 %v1476, %v1467
        %v1478 = vand.u32 %v1455, 65535
        %v1479 = vshrl.u32 %v1455, 16
        %v1480 = vand.u32 %v1450, 65535
        %v1481 = vshrl.u32 %v1450, 16
        %v1482 = vmul.u32 %v1478, %v1480
        %v1483 = vmul.u32 %v1478, %v1481
        %v1484 = vmul.u32 %v1479, %v1480
        %v1485 = vmul.u32 %v1479, %v1481
        %v1486 = vshll.u32 %v1483, 16
        %v1487 = vshrl.u32 %v1483, 16
        %v1488 = vshll.u32 %v1484, 16
        %v1489 = vshrl.u32 %v1484, 16
        %vm1490 = vc.u32 %v1482, %v1486
        %v1491 = vsel %vm1490, 1, 0
        %v1492 = vadd.s32 %v1482, %v1486
        %v1493 = vadd.s32 %v1485, %v1491
        %vm1494 = vc.u32 %v1492, %v1488
        %v1495 = vsel %vm1494, 1, 0
        %v1496 = vadd.s32 %v1492, %v1488
        %v1497 = vadd.s32 %v1493, %v1495
        %v1498 = vadd.s32 %v1497, %v1487
        %v1499 = vadd.s32 %v1498, %v1489
        %v1500 = vmul.u32 %v1455, %v1446
        %v1501 = vadd.s32 %v1477, %v1496
        %vm1502 = vc.u32 %v1477, %v1496
        %v1503 = vadd.s32 %v1499, 1
        %v1504 = vsel %vm1502, %v1503, %v1499
        %v1505 = vadd.s32 %v1500, %v1504
        %v1506 = vadd.s32 %v1505, 536870912
        %v1507 = vshrl.u32 %v1506, 30
        %v1508 = vshll.u32 %v1507, 30
        %v1509 = vsub.s32 %v1505, %v1508
        %vm1510 = vcmp.lt.s32.totalorder %v1509, 0
        %v1511 = vsub.s32 0, %v1509
        %v1512 = vsel %vm1510, %v1511, %v1509
        %v1513 = vclz %v1512
        %v1514 = vsub.s32 %v1513, 2
        %vm1515 = vcmp.gt.s32.totalorder 0, %v1514
        %v1516 = vsel %vm1515, 0, %v1514
        %v1517 = vsub.s32 32, %v1516
        %v1518 = vshll.u32 %v1509, %v1516
        %v1519 = vshrl.u32 %v1501, %v1517
        %v1520 = vor.u32 %v1518, %v1519
        %v1521 = vsub.s32 4294967266, %v1516
        %v1522 = vadd.s32 %v1521, 127
        %v1523 = vshll.u32 %v1522, 23
        %v1524 = vor.u32 4788187, %v1523
        %v1525 = vand.u32 2147483647, %v1524
        %v1527 = vcvt.s32.f32 %v1520
        %v1528 = vmul.f32 %v1527, %v1525
        %v1529 = vxor.u32 %v1528, 2147483648
        %v1530 = vsel %vm1409, %v1529, %v1528
        %v1531 = vsub.s32 4, %v1507
        %v1532 = vsel %vm1409, %v1531, %v1507
        %v1533 = vsel %vm1408, %v474, %v1530
        %v1534 = vsel %vm1408, 0, %v1532
        %v1535 = vmul.f32 %v1533, %v1533
        %v1536 = vmul.f32 %v1535, -0.001358992
        %v1537 = vadd.f32 %v1536, 0.041655596
        %v1538 = vmul.f32 %v1535, %v1537
        %v1539 = vadd.f32 %v1538, -0.4999988
        %v1540 = vmul.f32 %v1535, %v1539
        %v1541 = vadd.f32 1.0, %v1540
        %v1542 = vmul.f32 %v1533, %v1533
        %v1543 = vmul.f32 %v1542, -0.00019511016
        %v1544 = vadd.f32 %v1543, 0.008332121
        %v1545 = vmul.f32 %v1542, %v1544
        %v1546 = vadd.f32 %v1545, -0.16666654
        %v1547 = vmul.f32 %v1542, %v1546
        %v1548 = vadd.f32 %v1547, 1.0
        %v1549 = vmul.f32 %v1548, %v1533
        %vm1550 = vweird.f32 %v474
        %v1551 = vand.u32 %v1534, 3
        %vm1552 = vcmp.lt.s32.totalorder %v1551, 2
        %vm1553 = vcmp.eq.s32.totalorder %v1551, 0
        %v1554 = vxor.u32 %v1549, 2147483648
        %v1555 = vsel %vm1553, %v1541, %v1554
        %vm1556 = vcmp.eq.s32.totalorder %v1551, 2
        %v1557 = vxor.u32 %v1541, 2147483648
        %v1558 = vsel %vm1556, %v1557, %v1549
        %v1559 = vsel %vm1552, %v1555, %v1558
        %v1560 = vsel %vm1550, nan, %v1559
        %v1561 = vand.u32 2147483647, %v477
        %vm1562 = vcmp.le.f32.partialorder %v1561, 0.7853982
        %vm1563 = vcmp.lt.s32.totalorder %v477, 0
        %v1564 = vand.u32 %v477, 2139095040
        %v1565 = vshrl.u32 %v1564, 23
        %v1566 = vsub.s32 %v1565, 127
        %v1567 = vand.u32 2147483647, %v477
        %v1568 = vand.u32 %v1567, 8388607
        %v1569 = vor.u32 %v1568, 8388608
        %v1570 = vsub.s32 0, %v1569
        %v1571 = vadd.s32 %v1566, 1
        %vm1572 = vcmp.gt.s32.totalorder %v1571, 0
        %v1573 = vsel %vm1572, %v1571, 0
        %v1574 = vshrl.u32 %v1573, 5
        %v1575 = vand.u32 %v1573, 31
        %v1576 = vsub.s32 32, %v1575
        %v1577 = vshrl.u32 683565275, %v1576
        %v1578 = vshll.u32 683565275, %v1575
        %v1579 = vshrl.u32 2475754826, %v1576
        %v1580 = vor.u32 %v1578, %v1579
        %v1581 = vshll.u32 2475754826, %v1575
        %v1582 = vshrl.u32 2131351028, %v1576
        %v1583 = vor.u32 %v1581, %v1582
        %v1584 = vshll.u32 2131351028, %v1575
        %v1585 = vshrl.u32 2102212464, %v1576
        %v1586 = vor.u32 %v1584, %v1585
        %v1587 = vshll.u32 2102212464, %v1575
        %v1588 = vshrl.u32 920167782, %v1576
        %v1589 = vor.u32 %v1587, %v1588
        %v1590 = vshll.u32 920167782, %v1575
        %v1591 = vshrl.u32 1326507024, %v1576
        %v1592 = vor.u32 %v1590, %v1591
        %vm1593 = vcmp.lt.s32.totalorder %v1574, 1
        %vm1594 = vcmp.lt.s32.totalorder %v1574, 2
        %vm1595 = vcmp.lt.s32.totalorder %v1574, 3
        %vm1596 = vcmp.lt.s32.totalorder %v1574, 4
        %v1597 = vsel %vm1593, %v1577, %v1580
        %v1598 = vsel %vm1596, %v1586, 2102212464
        %v1599 = vsel %vm1595, %v1583, %v1598
        %v1600 = vsel %vm1594, %v1597, %v1599
        %v1601 = vsel %vm1593, %v1580, %v1583
        %v1602 = vsel %vm1596, %v1589, 920167782
        %v1603 = vsel %vm1595, %v1586, %v1602
        %v1604 = vsel %vm1594, %v1601, %v1603
        %v1605 = vsel %vm1593, %v1583, %v1586
        %v1606 = vsel %vm1596, %v1592, 1326507024
        %v1607 = vsel %vm1595, %v1589, %v1606
        %v1608 = vsel %vm1594, %v1605, %v1607
        %v1609 = vshll.u32 %v1569, 8
        %v1610 = vand.u32 %v1609, 65535
        %v1611 = vshrl.u32 %v1609, 16
        %v1612 = vand.u32 %v1608, 65535
        %v1613 = vshrl.u32 %v1608, 16
        %v1614 = vmul.u32 %v1610, %v1612
        %v1615 = vmul.u32 %v1610, %v1613
        %v1616 = vmul.u32 %v1611, %v1612
        %v1617 = vmul.u32 %v1611, %v1613
        %v1618 = vshll.u32 %v1615, 16
        %v1619 = vshrl.u32 %v1615, 16
        %v1620 = vshll.u32 %v1616, 16
        %v1621 = vshrl.u32 %v1616, 16
        %vm1622 = vc.u32 %v1614, %v1618
        %v1623 = vsel %vm1622, 1, 0
        %v1624 = vadd.s32 %v1614, %v1618
        %v1625 = vadd.s32 %v1617, %v1623
        %vm1626 = vc.u32 %v1624, %v1620
        %v1627 = vsel %vm1626, 1, 0
        %v1628 = vadd.s32 %v1624, %v1620
        %v1629 = vadd.s32 %v1625, %v1627
        %v1630 = vadd.s32 %v1629, %v1619
        %v1631 = vadd.s32 %v1630, %v1621
        %v1632 = vand.u32 %v1609, 65535
        %v1633 = vshrl.u32 %v1609, 16
        %v1634 = vand.u32 %v1604, 65535
        %v1635 = vshrl.u32 %v1604, 16
        %v1636 = vmul.u32 %v1632, %v1634
        %v1637 = vmul.u32 %v1632, %v1635
        %v1638 = vmul.u32 %v1633, %v1634
        %v1639 = vmul.u32 %v1633, %v1635
        %v1640 = vshll.u32 %v1637, 16
        %v1641 = vshrl.u32 %v1637, 16
        %v1642 = vshll.u32 %v1638, 16
        %v1643 = vshrl.u32 %v1638, 16
        %vm1644 = vc.u32 %v1636, %v1640
        %v1645 = vsel %vm1644, 1, 0
        %v1646 = vadd.s32 %v1636, %v1640
        %v1647 = vadd.s32 %v1639, %v1645
        %vm1648 = vc.u32 %v1646, %v1642
        %v1649 = vsel %vm1648, 1, 0
        %v1650 = vadd.s32 %v1646, %v1642
        %v1651 = vadd.s32 %v1647, %v1649
        %v1652 = vadd.s32 %v1651, %v1641
        %v1653 = vadd.s32 %v1652, %v1643
        %v1654 = vmul.u32 %v1609, %v1600
        %v1655 = vadd.s32 %v1631, %v1650
        %vm1656 = vc.u32 %v1631, %v1650
        %v1657 = vadd.s32 %v1653, 1
        %v1658 = vsel %vm1656, %v1657, %v1653
        %v1659 = vadd.s32 %v1654, %v1658
        %v1660 = vadd.s32 %v1659, 536870912
        %v1661 = vshrl.u32 %v1660, 30
        %v1662 = vshll.u32 %v1661, 30
        %v1663 = vsub.s32 %v1659, %v1662
        %vm1664 = vcmp.lt.s32.totalorder %v1663, 0
        %v1665 = vsub.s32 0, %v1663
        %v1666 = vsel %vm1664, %v1665, %v1663
        %v1667 = vclz %v1666
        %v1668 = vsub.s32 %v1667, 2
        %vm1669 = vcmp.gt.s32.totalorder 0, %v1668
        %v1670 = vsel %vm1669, 0, %v1668
        %v1671 = vsub.s32 32, %v1670
        %v1672 = vshll.u32 %v1663, %v1670
        %v1673 = vshrl.u32 %v1655, %v1671
        %v1674 = vor.u32 %v1672, %v1673
        %v1675 = vsub.s32 4294967266, %v1670
        %v1676 = vadd.s32 %v1675, 127
        %v1677 = vshll.u32 %v1676, 23
        %v1678 = vor.u32 4788187, %v1677
        %v1679 = vand.u32 2147483647, %v1678
        %v1681 = vcvt.s32.f32 %v1674
        %v1682 = vmul.f32 %v1681, %v1679
        %v1683 = vxor.u32 %v1682, 2147483648
        %v1684 = vsel %vm1563, %v1683, %v1682
        %v1685 = vsub.s32 4, %v1661
        %v1686 = vsel %vm1563, %v1685, %v1661
        %v1687 = vsel %vm1562, %v477, %v1684
        %v1688 = vsel %vm1562, 0, %v1686
        %v1689 = vmul.f32 %v1687, %v1687
        %v1690 = vmul.f32 %v1689, -0.001358992
        %v1691 = vadd.f32 %v1690, 0.041655596
        %v1692 = vmul.f32 %v1689, %v1691
        %v1693 = vadd.f32 %v1692, -0.4999988
        %v1694 = vmul.f32 %v1689, %v1693
        %v1695 = vadd.f32 1.0, %v1694
        %v1696 = vmul.f32 %v1687, %v1687
        %v1697 = vmul.f32 %v1696, -0.00019511016
        %v1698 = vadd.f32 %v1697, 0.008332121
        %v1699 = vmul.f32 %v1696, %v1698
        %v1700 = vadd.f32 %v1699, -0.16666654
        %v1701 = vmul.f32 %v1696, %v1700
        %v1702 = vadd.f32 %v1701, 1.0
        %v1703 = vmul.f32 %v1702, %v1687
        %vm1704 = vweird.f32 %v477
        %v1705 = vand.u32 %v1688, 3
        %vm1706 = vcmp.lt.s32.totalorder %v1705, 2
        %vm1707 = vcmp.eq.s32.totalorder %v1705, 0
        %v1708 = vxor.u32 %v1703, 2147483648
        %v1709 = vsel %vm1707, %v1695, %v1708
        %vm1710 = vcmp.eq.s32.totalorder %v1705, 2
        %v1711 = vxor.u32 %v1695, 2147483648
        %v1712 = vsel %vm1710, %v1711, %v1703
        %v1713 = vsel %vm1706, %v1709, %v1712
        %v1714 = vsel %vm1704, nan, %v1713
        %1719 = vrot.lane.b32.xlu0 %v1252, 8
        %v1720 = vpop.permute.xlu0 %1719
        %1721 = vrot.lane.b32.xlu0 %v1406, 8
        %v1722 = vpop.permute.xlu0 %1721
        %1723 = vrot.lane.b32.xlu0 %v1560, 8
        %v1724 = vpop.permute.xlu0 %1723
        %1725 = vrot.lane.b32.xlu0 %v1714, 8
        %v1726 = vpop.permute.xlu0 %1725
        %vm1731 = vcmask 64512
        %v1732 = vsel %vm1731, %v633, %v1720
        %v1733 = vsel %vm1731, %v788, %v1722
        %v1734 = vsel %vm1731, %v943, %v1724
        %v1735 = vsel %vm1731, %v1098, %v1726
        %v1736 = vadd.f32 %v1732, %v427
        %v1737 = vadd.f32 %v1733, %v428
        %v1738 = vadd.f32 %v1734, %v429
        %v1739 = vadd.f32 %v1735, %v430
        %v1740 = vld [vmem:[#allocation2] sm:$0xff]
        %v1741 = vld [vmem:[#allocation2 + $0x8] sm:$0xf]
        %v1742 = vld [vmem:[%s4] sm:$0x1]
        %v1744 = vperm.slane %v1742, 0
        %vm1746 = vcmask 97280
        %v1748 = vsel %vm1746, %v431, 0
        %v1751 = vsel %vm1746, %v432, 0
        %v1754 = vsel %vm1746, %v433, 0
        %v1757 = vsel %vm1746, %v434, 0
        %vm1759 = vcmask 1043456
        %v1761 = vsel %vm1759, %v1741, 0
        %1763 = vmatpush.msra.mxu0 0.0
        %1764 = vmatpush.msra.mxu0 0.0
        %1765 = vmatpush.msra.mxu0 0.0
        %1766 = vmatpush.msra.mxu0 0.0
        %1767 = vmatpush.msra.mxu0 0.0
        %1768 = vmatpush.msra.mxu0 0.0
        %1769 = vmatpush.msra.mxu0 0.0
        %1770 = vmatpush.msra.mxu0 0.0
        %1771 = vmatpush.msra.mxu0 0.0
        %1772 = vmatpush.msra.mxu0 0.0
        %1773 = vmatpush.msra.mxu0 0.0
        %1774 = vmatpush.msra.mxu0 0.0
        %1775 = vmatpush.msra.mxu0 0.0
        %1776 = vmatpush.msra.mxu0 0.0
        %1777 = vmatpush.msra.mxu0 %v1761
        %1778 = vmatpush.msra.mxu0 %v1740
        %1779 = vmatmul.f32.gmra.mxu0 %v1748
        %v1780 = vpop.f32.mrf.mxu0
        %v1781 = vadd.f32 %v1744, %v1780
        %1782 = vmatmul.f32.gmra.mxu0 %v1751
        %v1783 = vpop.f32.mrf.mxu0
        %v1784 = vadd.f32 %v1744, %v1783
        %1785 = vmatmul.f32.gmra.mxu0 %v1754
        %v1786 = vpop.f32.mrf.mxu0
        %v1787 = vadd.f32 %v1744, %v1786
        %1788 = vmatmul.f32.gmra.mxu0 %v1757
        %v1789 = vpop.f32.mrf.mxu0
        %v1790 = vadd.f32 %v1744, %v1789
        %1791 = vdwg.mxu0
        %v1792 = vmax.f32 %v1781, 0.0
        %v1793 = vmax.f32 %v1784, 0.0
        %v1794 = vmax.f32 %v1787, 0.0
        %v1795 = vmax.f32 %v1790, 0.0
        %v1796 = vld [vmem:[%s5] sm:$0xff]
        %v1797 = vld [vmem:[%s5 + $0x8] sm:$0xff]
        %v1798 = vld [vmem:[%s5 + $0x10] sm:$0xff]
        %v1799 = vld [vmem:[%s5 + $0x18] sm:$0xff]
        %v1800 = vld [vmem:[%s6] sm:$0x1]
        %v1802 = vperm.slane %v1800, 0
        %vm1804 = vcmask 261120
        %v1806 = vsel %vm1804, %v1792, 0
        %v1809 = vsel %vm1804, %v1793, 0
        %v1812 = vsel %vm1804, %v1794, 0
        %v1815 = vsel %vm1804, %v1795, 0
        %1817 = vmatpush.msra.mxu0 0.0
        %1818 = vmatpush.msra.mxu0 0.0
        %1819 = vmatpush.msra.mxu0 0.0
        %1820 = vmatpush.msra.mxu0 0.0
        %1821 = vmatpush.msra.mxu0 0.0
        %1822 = vmatpush.msra.mxu0 0.0
        %1823 = vmatpush.msra.mxu0 0.0
        %1824 = vmatpush.msra.mxu0 0.0
        %1825 = vmatpush.msra.mxu0 0.0
        %1826 = vmatpush.msra.mxu0 0.0
        %1827 = vmatpush.msra.mxu0 0.0
        %1828 = vmatpush.msra.mxu0 0.0
        %1829 = vmatpush.msra.mxu0 %v1799
        %1830 = vmatpush.msra.mxu0 %v1798
        %1831 = vmatpush.msra.mxu0 %v1797
        %1832 = vmatpush.msra.mxu0 %v1796
        %1833 = vmatmul.f32.gmra.mxu0 %v1806
        %v1834 = vpop.f32.mrf.mxu0
        %v1835 = vadd.f32 %v1802, %v1834
        %1836 = vmatmul.f32.gmra.mxu0 %v1809
        %v1837 = vpop.f32.mrf.mxu0
        %v1838 = vadd.f32 %v1802, %v1837
        %1839 = vmatmul.f32.gmra.mxu0 %v1812
        %v1840 = vpop.f32.mrf.mxu0
        %v1841 = vadd.f32 %v1802, %v1840
        %1842 = vmatmul.f32.gmra.mxu0 %v1815
        %v1843 = vpop.f32.mrf.mxu0
        %v1844 = vadd.f32 %v1802, %v1843
        %1845 = vdwg.mxu0
        %v1846 = vmax.f32 %v1835, 0.0
        %v1847 = vmax.f32 %v1838, 0.0
        %v1848 = vmax.f32 %v1841, 0.0
        %v1849 = vmax.f32 %v1844, 0.0
        %1854 = vrot.lane.b32.xlu0 %v1846, 16
        %v1855 = vpop.permute.xlu0 %1854
        %1856 = vrot.lane.b32.xlu0 %v1847, 16
        %v1857 = vpop.permute.xlu0 %1856
        %1858 = vrot.lane.b32.xlu0 %v1848, 16
        %v1859 = vpop.permute.xlu0 %1858
        %1860 = vrot.lane.b32.xlu0 %v1849, 16
        %v1861 = vpop.permute.xlu0 %1860
        %v1866 = vsel %vm437, %v1736, %v1855
        %v1867 = vsel %vm437, %v1737, %v1857
        %v1868 = vsel %vm437, %v1738, %v1859
        %v1869 = vsel %vm437, %v1739, %v1861
        %v1870 = vld [vmem:[%s7] sm:$0xff]
        %v1871 = vld [vmem:[%s7 + $0x8] sm:$0xff]
        %v1872 = vld [vmem:[%s7 + $0x10] sm:$0xff]
        %v1873 = vld [vmem:[%s7 + $0x18] sm:$0xff]
        %v1874 = vld [vmem:[%s7 + $0x20] sm:$0xff]
        %v1875 = vld [vmem:[%s7 + $0x28] sm:$0xff]
        %v1876 = vld [vmem:[%s8] sm:$0x1]
        %v1878 = vperm.slane %v1876, 0
        %vm1880 = vcmask 392192
        %v1882 = vsel %vm1880, %v1866, 0
        %v1885 = vsel %vm1880, %v1867, 0
        %v1888 = vsel %vm1880, %v1868, 0
        %v1891 = vsel %vm1880, %v1869, 0
        %1893 = vmatpush.msra.mxu0 0.0
        %1894 = vmatpush.msra.mxu0 0.0
        %1895 = vmatpush.msra.mxu0 0.0
        %1896 = vmatpush.msra.mxu0 0.0
        %1897 = vmatpush.msra.mxu0 0.0
        %1898 = vmatpush.msra.mxu0 0.0
        %1899 = vmatpush.msra.mxu0 0.0
        %1900 = vmatpush.msra.mxu0 0.0
        %1901 = vmatpush.msra.mxu0 0.0
        %1902 = vmatpush.msra.mxu0 0.0
        %1903 = vmatpush.msra.mxu0 %v1875
        %1904 = vmatpush.msra.mxu0 %v1874
        %1905 = vmatpush.msra.mxu0 %v1873
        %1906 = vmatpush.msra.mxu0 %v1872
        %1907 = vmatpush.msra.mxu0 %v1871
        %1908 = vmatpush.msra.mxu0 %v1870
        %1909 = vmatmul.f32.gmra.mxu0 %v1882
        %v1910 = vpop.f32.mrf.mxu0
        %v1911 = vadd.f32 %v1878, %v1910
        %1912 = vmatmul.f32.gmra.mxu0 %v1885
        %v1913 = vpop.f32.mrf.mxu0
        %v1914 = vadd.f32 %v1878, %v1913
        %1915 = vmatmul.f32.gmra.mxu0 %v1888
        %v1916 = vpop.f32.mrf.mxu0
        %v1917 = vadd.f32 %v1878, %v1916
        %1918 = vmatmul.f32.gmra.mxu0 %v1891
        %v1919 = vpop.f32.mrf.mxu0
        %v1920 = vadd.f32 %v1878, %v1919
        %1921 = vdwg.mxu0
        %v1922 = vmax.f32 %v1911, 0.0
        %v1923 = vmax.f32 %v1914, 0.0
        %v1924 = vmax.f32 %v1917, 0.0
        %v1925 = vmax.f32 %v1920, 0.0
        %v1926 = vld [vmem:[%s9] sm:$0xff]
        %v1927 = vld [vmem:[%s9 + $0x8] sm:$0xff]
        %v1928 = vld [vmem:[%s9 + $0x10] sm:$0xff]
        %v1929 = vld [vmem:[%s9 + $0x18] sm:$0xff]
        %v1930 = vld [vmem:[%s9 + $0x20] sm:$0xff]
        %v1931 = vld [vmem:[%s9 + $0x28] sm:$0xff]
        %v1932 = vld [vmem:[%s9 + $0x30] sm:$0xff]
        %v1933 = vld [vmem:[%s9 + $0x38] sm:$0xff]
        %v1934 = vld [vmem:[%s10] sm:$0x1]
        %v1936 = vperm.slane %v1934, 0
        %vm1938 = vcmask 523264
        %v1940 = vsel %vm1938, %v1922, 0
        %v1943 = vsel %vm1938, %v1923, 0
        %v1946 = vsel %vm1938, %v1924, 0
        %v1949 = vsel %vm1938, %v1925, 0
        %1951 = vmatpush.msra.mxu0 0.0
        %1952 = vmatpush.msra.mxu0 0.0
        %1953 = vmatpush.msra.mxu0 0.0
        %1954 = vmatpush.msra.mxu0 0.0
        %1955 = vmatpush.msra.mxu0 0.0
        %1956 = vmatpush.msra.mxu0 0.0
        %1957 = vmatpush.msra.mxu0 0.0
        %1958 = vmatpush.msra.mxu0 0.0
        %1959 = vmatpush.msra.mxu0 %v1933
        %1960 = vmatpush.msra.mxu0 %v1932
        %1961 = vmatpush.msra.mxu0 %v1931
        %1962 = vmatpush.msra.mxu0 %v1930
        %1963 = vmatpush.msra.mxu0 %v1929
        %1964 = vmatpush.msra.mxu0 %v1928
        %1965 = vmatpush.msra.mxu0 %v1927
        %1966 = vmatpush.msra.mxu0 %v1926
        %1967 = vmatmul.f32.gmra.mxu0 %v1940
        %v1968 = vpop.f32.mrf.mxu0
        %v1969 = vadd.f32 %v1936, %v1968
        %1970 = vmatmul.f32.gmra.mxu0 %v1943
        %v1971 = vpop.f32.mrf.mxu0
        %v1972 = vadd.f32 %v1936, %v1971
        %1973 = vmatmul.f32.gmra.mxu0 %v1946
        %v1974 = vpop.f32.mrf.mxu0
        %v1975 = vadd.f32 %v1936, %v1974
        %1976 = vmatmul.f32.gmra.mxu0 %v1949
        %v1977 = vpop.f32.mrf.mxu0
        %v1978 = vadd.f32 %v1936, %v1977
        %1979 = vdwg.mxu0
        %1980 = vst [vmem:[%s413] sm:$0xff] %v1969
        %1981 = vst [vmem:[%s413 + $0x8] sm:$0xff] %v1972
        %1982 = vst [vmem:[%s413 + $0x10] sm:$0xff] %v1975
        %1983 = vst [vmem:[%s413 + $0x18] sm:$0xff] %v1978
        %s1984 = sand.u32 %s275, 1
        %s1985 = scalar_lea.sflag [#allocation4], %s1984
        %s1986 = sand.u32 %s275, 1
        %s1987 = smul.addr %s1986, 32
        %s1988 = scalar_lea.vmem [#allocation5], %s1987
        // Predicated region
        $region69: #{tpu_custom_call.1} parent=63 // pred_check
          %p1989 = pneg %p285
        $region70: #{tpu_custom_call.1} parent=63 // pred_check_branch
          %1991 = sbr.rel (%p1989) target = $region72
        $region71: #{tpu_custom_call.1} parent=63 // pred_region
          %s1992 = smul.u32 4, %s26
          %1994 = vsyncadd %s1985, 0
          %s1995 = smul.addr %s1992, 8
          %s1996 = scalar_lea.hbm %s11, %s1995
          %s1997 = sshll.u32 %s1988, 4
          %s1998 = int_to_ptr.vmem [resolvable:$true] %s1997
          %s1999 = sshll.u32 %s1996, 4
          %s2000 = int_to_ptr.hbm [resolvable:$true] %s1999
          %2005 = dma.vmem_to_hbm [thread:$0]  %s1998, 512, %s2000, %s1985, 128, 128, 8
        $region72: #{tpu_custom_call.1} parent=63 // pred_fallthru
          _
      $region64: #{tpu_custom_call.1} parent=5 // pred_fallthru
        _
      %p2006 = scmp.le.s32.totalorder 2, %s21
      // Predicated region
      $region73: #{tpu_custom_call.1} parent=5 // pred_check
        %p2007 = pneg %p2006
      $region74: #{tpu_custom_call.1} parent=5 // pred_check_branch
        %2009 = sbr.rel (%p2007) target = $region76
      $region75: #{tpu_custom_call.1} parent=5 // pred_region
        %s2010 = ssub.s32 %s21, 2
        // Predicated region
        $region77: #{tpu_custom_call.1} parent=75 // pred_check
          %p2011 = pneg %p291
        $region78: #{tpu_custom_call.1} parent=75 // pred_check_branch
          %2013 = sbr.rel (%p2011) target = $region80
        $region79: #{tpu_custom_call.1} parent=75 // pred_region
          %s2014 = sand.u32 %s276, 1
          %s2015 = scalar_lea.sflag [#allocation4], %s2014
          %s2016 = sand.u32 %s276, 1
          %s2017 = smul.addr %s2016, 32
          %s2018 = scalar_lea.vmem [#allocation5], %s2017
          %2020 = dma.done %s2015, 512
        $region80: #{tpu_custom_call.1} parent=75 // pred_fallthru
          _
      $region76: #{tpu_custom_call.1} parent=5 // pred_fallthru
        _
    $region6: #{tpu_custom_call.1} parent=1 // loop_footer
      %s25 = sadd.s32 1, %s21
    $region7: #{tpu_custom_call.1} parent=1 // loop_footer_branch
      %20 = sbr.rel target = $region3
    $region8: #{tpu_custom_call.1} parent=1 // loop_exit
      _
    %2021 = vsyncpa [#allocation3], 1
    %s2022 = scalar_lea.sflag [#allocation3], 1
    %2023 = vsyncpa %s2022, 1
    %2024 = vsyncpa [#allocation4], 1
    %s2025 = scalar_lea.sflag [#allocation4], 1
    %2026 = vsyncpa %s2025, 1

</llo_original>
